<compile_context>
chip_gen: v7x
topology: tpu7x:2x2x1
jax: 0.10.0
libtpu: 0.0.40
codegen_flags: <defaults>
</compile_context>

<pallas_src>
import jax
import jax.numpy as jnp
from jax import lax
from jax.experimental import pallas as pl
from jax.experimental.pallas import tpu as pltpu


def mlp_kernel(x_ref, w1_ref, b1_ref, w2_ref, b2_ref, w3_ref, b3_ref, o_ref):
    x = x_ref[...]                                    # (block_n, d)
    # a1: Linear(d, q1) + ReLU.  Contract feature dims: (q1,d) x (block_n,d)
    # -> (q1, block_n); batch lives on lanes from here on.
    h1 = lax.dot_general(w1_ref[...], x, (((1,), (1,)), ((), ())),
                         preferred_element_type=jnp.float32)
    h1 = jnp.maximum(h1 + b1_ref[...].astype(jnp.float32), 0.0)
    # a2: Linear(q1, q2) + ReLU -> (q2, block_n)
    h2 = lax.dot_general(w2_ref[...], h1.astype(w2_ref.dtype),
                         (((1,), (0,)), ((), ())),
                         preferred_element_type=jnp.float32)
    h2 = jnp.maximum(h2 + b2_ref[...].astype(jnp.float32), 0.0)
    # a3: Linear(q2, 1) + Sigmoid -> (1, block_n), fully lane-packed
    z = lax.dot_general(w3_ref[...], h2.astype(w3_ref.dtype),
                        (((1,), (0,)), ((), ())),
                        preferred_element_type=jnp.float32)
    z = jax.nn.sigmoid(z + b3_ref[...].astype(jnp.float32))
    o_ref[...] = z.astype(o_ref.dtype)                # lane-dense row store


def neural_net_forward(x, params, *, block_n=8192, compute_dtype=None):
    """x: [N, d]. params: PyTorch-native [out, in] weights and [out, 1] biases."""
    w1, b1 = params["w1"], params["b1"]
    w2, b2 = params["w2"], params["b2"]
    w3, b3 = params["w3"], params["b3"]
    N, d = x.shape
    q1 = w1.shape[0]
    q2 = w2.shape[0]

    if compute_dtype is not None:
        # Optional HBM-traffic saver (bf16 recommended on v6e/v7x); kernel
        # accumulation stays f32.  Loosen tolerances vs. f32 reference (~1e-2).
        x = x.astype(compute_dtype)
        w1, b1, w2, b2, w3, b3 = (a.astype(compute_dtype)
                                  for a in (w1, b1, w2, b2, w3, b3))

    assert block_n % 128 == 0, "block_n must be a multiple of 128"
    # Clamp so small batches still give >= 2 grid steps (v7x has 2 TensorCores
    # and only the batch axis is in the grid); never below one 128-row tile.
    half_n = max(128, pl.cdiv(pl.cdiv(N, 2), 128) * 128)
    block_n = max(128, min(block_n, half_n))
    n_blocks = pl.cdiv(N, block_n)
    padded_n = n_blocks * block_n          # output allocation only; x is NOT padded

    out_row = pl.pallas_call(
        mlp_kernel,
        out_shape=jax.ShapeDtypeStruct((1, padded_n), jnp.float32),
        grid_spec=pltpu.PrefetchScalarGridSpec(
            num_scalar_prefetch=0,
            grid=(n_blocks,),
            in_specs=[
                # x tile streamed; the last (ragged) tile's DMA is clipped to
                # array bounds, garbage tail columns are sliced off below.
                pl.BlockSpec((block_n, d), lambda i: (i, 0)),
                pl.BlockSpec((q1, d), lambda i: (0, 0)),     # w1 (VMEM-resident)
                pl.BlockSpec((q1, 1), lambda i: (0, 0)),     # b1
                pl.BlockSpec((q2, q1), lambda i: (0, 0)),    # w2
                pl.BlockSpec((q2, 1), lambda i: (0, 0)),     # b2
                pl.BlockSpec((1, q2), lambda i: (0, 0)),     # w3
                pl.BlockSpec((1, 1), lambda i: (0, 0)),      # b3
            ],
            out_specs=pl.BlockSpec((1, block_n), lambda i: (0, i)),
        ),
        compiler_params=pltpu.CompilerParams(
            dimension_semantics=("parallel",),
            vmem_limit_bytes=32 * 1024 * 1024),
    )(x, w1, b1, w2, b2, w3, b3)

    # (1, padded_n) row-major == (padded_n, 1); drop any garbage tail rows.
    return out_row.reshape(padded_n, 1)[:N]


def init_params(key, d, q1, q2):
    """Deterministic synthetic init; shapes match nn.Linear ([out, in] / [out, 1])."""
    k1, k2, k3, k4, k5, k6 = jax.random.split(key, 6)

    def u(k, shape, fan_in):
        bound = 1.0 / jnp.sqrt(fan_in)
        return jax.random.uniform(k, shape, jnp.float32, -bound, bound)

    return {
        "w1": u(k1, (q1, d), d),   "b1": u(k2, (q1, 1), d),
        "w2": u(k3, (q2, q1), q1), "b2": u(k4, (q2, 1), q1),
        "w3": u(k5, (1, q2), q2),  "b3": u(k6, (1, 1), q2),
    }


def reference_forward(x, p):
    h1 = jnp.maximum(x @ p["w1"].T + p["b1"].T, 0.0)
    h2 = jnp.maximum(h1 @ p["w2"].T + p["b2"].T, 0.0)
    return jax.nn.sigmoid(h2 @ p["w3"].T + p["b3"].T)


if __name__ == "__main__":
    d, q1, q2 = 16, 32, 32
    N = 2000  # ragged on purpose: exercises the clipped tail DMA; 2 grid steps

    key = jax.random.PRNGKey(0)
    kx, kp = jax.random.split(key)
    x = jax.random.normal(kx, (N, d), jnp.float32)
    params = init_params(kp, d, q1, q2)

    out = neural_net_forward(x, params)
    out = jax.block_until_ready(out)

    ref = reference_forward(x, params)
    assert out.shape == (N, 1)
    assert jnp.allclose(out, ref, atol=1e-5, rtol=1e-5)

    print("KERNEL_OK")
</pallas_src>

<mosaic_0001>
module attributes {stable_mosaic.version = 11 : i64} {
  func.func @mlp_kernel(%arg0: i32, %arg1: memref<1024x16xf32, #tpu.memory_space<vmem>>, %arg2: memref<32x16xf32, #tpu.memory_space<vmem>>, %arg3: memref<32x1xf32, #tpu.memory_space<vmem>>, %arg4: memref<32x32xf32, #tpu.memory_space<vmem>>, %arg5: memref<32x1xf32, #tpu.memory_space<vmem>>, %arg6: memref<1x32xf32, #tpu.memory_space<vmem>>, %arg7: memref<1x1xf32, #tpu.memory_space<vmem>>, %arg8: memref<1x1024xf32, #tpu.memory_space<vmem>>) attributes {dimension_semantics = [#tpu.dimension_semantics<parallel>], iteration_bounds = array<i64: 2>, scalar_prefetch = 0 : i64, scratch_operands = 0 : i64, tpu.core_type = #tpu.core_type<tc>, window_params = [{transform_indices = @transform_0, window_bounds = array<i64: 1024, 16>}, {pipeline_mode = #tpu.pipeline_mode<synchronous>, transform_indices = @transform_1, window_bounds = array<i64: 32, 16>}, {pipeline_mode = #tpu.pipeline_mode<synchronous>, transform_indices = @transform_2, window_bounds = array<i64: 32, 1>}, {pipeline_mode = #tpu.pipeline_mode<synchronous>, transform_indices = @transform_3, window_bounds = array<i64: 32, 32>}, {pipeline_mode = #tpu.pipeline_mode<synchronous>, transform_indices = @transform_4, window_bounds = array<i64: 32, 1>}, {pipeline_mode = #tpu.pipeline_mode<synchronous>, transform_indices = @transform_5, window_bounds = array<i64: 1, 32>}, {pipeline_mode = #tpu.pipeline_mode<synchronous>, transform_indices = @transform_6, window_bounds = array<i64: 1, 1>}, {transform_indices = @transform_7, window_bounds = array<i64: 1, 1024>}]} {
    %c0 = arith.constant 0 : index
    %c0_0 = arith.constant 0 : index
    %0 = vector.load %arg1[%c0, %c0_0] : memref<1024x16xf32, #tpu.memory_space<vmem>>, vector<1024x16xf32>
    %c0_1 = arith.constant 0 : index
    %c0_2 = arith.constant 0 : index
    %1 = vector.load %arg2[%c0_1, %c0_2] : memref<32x16xf32, #tpu.memory_space<vmem>>, vector<32x16xf32>
    %cst = arith.constant dense<0.000000e+00> : vector<32x1024xf32>
    %2 = tpu.matmul %1, %0, %cst {dimension_numbers = #tpu.dot_dimension_numbers<[1], [1], [0], [0], [0, 0, 1, 0], [], []>} : vector<32x16xf32>, vector<1024x16xf32>, vector<32x1024xf32> -> vector<32x1024xf32>
    %c0_3 = arith.constant 0 : index
    %c0_4 = arith.constant 0 : index
    %3 = vector.load %arg3[%c0_3, %c0_4] : memref<32x1xf32, #tpu.memory_space<vmem>>, vector<32x1xf32>
    %4 = vector.broadcast %3 : vector<32x1xf32> to vector<32x1024xf32>
    %5 = arith.addf %2, %4 : vector<32x1024xf32>
    %cst_5 = arith.constant 0.000000e+00 : f32
    %6 = vector.broadcast %cst_5 : f32 to vector<32x1024xf32>
    %7 = arith.maximumf %5, %6 : vector<32x1024xf32>
    %c0_6 = arith.constant 0 : index
    %c0_7 = arith.constant 0 : index
    %8 = vector.load %arg4[%c0_6, %c0_7] : memref<32x32xf32, #tpu.memory_space<vmem>>, vector<32x32xf32>
    %cst_8 = arith.constant dense<0.000000e+00> : vector<32x1024xf32>
    %9 = tpu.matmul %8, %7, %cst_8 {dimension_numbers = #tpu.dot_dimension_numbers<[1], [0], [0], [1], [0, 0, 1, 1], [], []>} : vector<32x32xf32>, vector<32x1024xf32>, vector<32x1024xf32> -> vector<32x1024xf32>
    %c0_9 = arith.constant 0 : index
    %c0_10 = arith.constant 0 : index
    %10 = vector.load %arg5[%c0_9, %c0_10] : memref<32x1xf32, #tpu.memory_space<vmem>>, vector<32x1xf32>
    %11 = vector.broadcast %10 : vector<32x1xf32> to vector<32x1024xf32>
    %12 = arith.addf %9, %11 : vector<32x1024xf32>
    %cst_11 = arith.constant 0.000000e+00 : f32
    %13 = vector.broadcast %cst_11 : f32 to vector<32x1024xf32>
    %14 = arith.maximumf %12, %13 : vector<32x1024xf32>
    %c0_12 = arith.constant 0 : index
    %c0_13 = arith.constant 0 : index
    %15 = vector.load %arg6[%c0_12, %c0_13] : memref<1x32xf32, #tpu.memory_space<vmem>>, vector<1x32xf32>
    %cst_14 = arith.constant dense<0.000000e+00> : vector<1x1024xf32>
    %16 = tpu.matmul %15, %14, %cst_14 {dimension_numbers = #tpu.dot_dimension_numbers<[1], [0], [0], [1], [0, 0, 1, 1], [], []>} : vector<1x32xf32>, vector<32x1024xf32>, vector<1x1024xf32> -> vector<1x1024xf32>
    %c0_15 = arith.constant 0 : index
    %c0_16 = arith.constant 0 : index
    %17 = vector.load %arg7[%c0_15, %c0_16] : memref<1x1xf32, #tpu.memory_space<vmem>>, vector<1x1xf32>
    %18 = vector.broadcast %17 : vector<1x1xf32> to vector<1x1024xf32>
    %19 = arith.addf %16, %18 : vector<1x1024xf32>
    %20 = arith.negf %19 : vector<1x1024xf32>
    %21 = math.exp %20 : vector<1x1024xf32>
    %cst_17 = arith.constant 1.000000e+00 : f32
    %22 = vector.broadcast %cst_17 : f32 to vector<1x1024xf32>
    %23 = arith.addf %22, %21 : vector<1x1024xf32>
    %24 = arith.divf %22, %23 : vector<1x1024xf32>
    %c0_18 = arith.constant 0 : index
    %c0_19 = arith.constant 0 : index
    %25 = vector.load %arg8[%c0_18, %c0_19] : memref<1x1024xf32, #tpu.memory_space<vmem>>, vector<1x1024xf32>
    tpu.vector_store %arg8[%c0_18, %c0_19], %24 {strides = array<i32>} : memref<1x1024xf32, #tpu.memory_space<vmem>>, vector<1x1024xf32>,
    return
  }
  func.func @transform_0(%arg0: i32) -> (i32, i32) {
    %c0_i32 = arith.constant 0 : i32
    %c0_i32_0 = arith.constant 0 : i32
    return %arg0, %c0_i32 : i32, i32
  }
  func.func @transform_1(%arg0: i32) -> (i32, i32) {
    %c0_i32 = arith.constant 0 : i32
    %c0_i32_0 = arith.constant 0 : i32
    %c0_i32_1 = arith.constant 0 : i32
    return %c0_i32, %c0_i32_0 : i32, i32
  }
  func.func @transform_2(%arg0: i32) -> (i32, i32) {
    %c0_i32 = arith.constant 0 : i32
    %c0_i32_0 = arith.constant 0 : i32
    %c0_i32_1 = arith.constant 0 : i32
    return %c0_i32, %c0_i32_0 : i32, i32
  }
  func.func @transform_3(%arg0: i32) -> (i32, i32) {
    %c0_i32 = arith.constant 0 : i32
    %c0_i32_0 = arith.constant 0 : i32
    %c0_i32_1 = arith.constant 0 : i32
    return %c0_i32, %c0_i32_0 : i32, i32
  }
  func.func @transform_4(%arg0: i32) -> (i32, i32) {
    %c0_i32 = arith.constant 0 : i32
    %c0_i32_0 = arith.constant 0 : i32
    %c0_i32_1 = arith.constant 0 : i32
    return %c0_i32, %c0_i32_0 : i32, i32
  }
  func.func @transform_5(%arg0: i32) -> (i32, i32) {
    %c0_i32 = arith.constant 0 : i32
    %c0_i32_0 = arith.constant 0 : i32
    %c0_i32_1 = arith.constant 0 : i32
    return %c0_i32, %c0_i32_0 : i32, i32
  }
  func.func @transform_6(%arg0: i32) -> (i32, i32) {
    %c0_i32 = arith.constant 0 : i32
    %c0_i32_0 = arith.constant 0 : i32
    %c0_i32_1 = arith.constant 0 : i32
    return %c0_i32, %c0_i32_0 : i32, i32
  }
  func.func @transform_7(%arg0: i32) -> (i32, i32) {
    %c0_i32 = arith.constant 0 : i32
    %c0_i32_0 = arith.constant 0 : i32
    return %c0_i32, %arg0 : i32, i32
  }
}

</mosaic_0001>

<llo_original>
// kernel: tpu_custom_call.1
$region0: #{tpu_custom_call.1}
  #allocation0 [shape = 'u32[]', space=smem, size = 0x4, offset = 0x4, fixed_abs, tag = 'smem constant byte address 0x4 - core index']
  #allocation1 [shape = 'u32[144,128]{1,0:T(1,128)}', space=vmem, size = 0x12000, scoped, tag = 'internal scratch']
  #allocation2 [shape = 'f32[1,1]{1,0:T(1,128)S(1)}', space=vmem, size = 0x200, scoped, tag = 'scoped memory for tpu_custom_call.1']
  %s0 = inlined_call_operand.vmem [shape: f32[2000,16], index: 0, kind: input, shape index: {}]
  %s1 = inlined_call_operand.vmem [shape: f32[32,16], index: 1, kind: input, shape index: {}]
  %s2 = inlined_call_operand.vmem [shape: f32[32,1], index: 2, kind: input, shape index: {}]
  %s3 = inlined_call_operand.vmem [shape: f32[32,32], index: 3, kind: input, shape index: {}]
  %s4 = inlined_call_operand.vmem [shape: f32[32,1], index: 4, kind: input, shape index: {}]
  %s5 = inlined_call_operand.vmem [shape: f32[1,32], index: 5, kind: input, shape index: {}]
  %s6 = inlined_call_operand.<no memory space> [shape: f32[1,1], index: 6, kind: input, shape index: {}]
  %s7 = inlined_call_operand.hbm [shape: f32[1,2048], index: 7, kind: output, shape index: {}]
  %s8 = sld [smem:[#allocation0]]
  $region61: #{tpu_custom_call.1} parent=0
    _
  %s10 = ssub.s32 1, %s8
  %s11 = scalar_select 0, %s10, %s8
  %v12 = vstv %s6
  %13 = vst [vmem:[#allocation2] sm:$0x1] %v12
  $region1: #{tpu_custom_call.1} parent=0
    #allocation3 [shape = 'u8[8192]{0}', space=vmem, size = 0x2000, scoped, tag = 'output window, operand 0']
    #allocation4 [shape = 's32[2]{0}', space=sflag, size = 0x8, scoped, tag = 'scoped memory for tpu_custom_call.1']
    %14 = vsyncpa [#allocation4], 0
    %s15 = scalar_lea.sflag [#allocation4], 1
    %16 = vsyncpa %s15, 0
    loop: start=0, step=1, limit=4
    $region2: #{tpu_custom_call.1} parent=1 // loop_pre_header
      _
    $region3: #{tpu_custom_call.1} parent=1 // loop_header
      %s18 = sphi 0, %s22
      %p19 = scmp.ge.s32.totalorder %s18, 4
      %s28 = sphi 0, %s30
      %s31 = sphi 0, %s28
      %s32 = sphi 0, %s31
      %s48 = sphi 0, %s32
      %s52 = sphi 0, %s52
      %s54 = sphi 0, %s52
      %s55 = sphi 0, %s54
      %s69 = sphi 0, %s55
      %s73 = sphi 0, %s73
      %s75 = sphi 0, %s73
      %s76 = sphi 0, %s75
      %s90 = sphi 0, %s76
      %s94 = sphi 0, %s94
      %s96 = sphi 0, %s94
      %s97 = sphi 0, %s96
      %s111 = sphi 0, %s97
      %s115 = sphi 0, %s115
      %s117 = sphi 0, %s115
      %s118 = sphi 0, %s117
      %s132 = sphi 0, %s118
      %s136 = sphi 0, %s136
      %s138 = sphi 0, %s136
      %s139 = sphi 0, %s138
      %s153 = sphi 0, %s139
      %s157 = sphi 0, %s157
      %s159 = sphi 0, %s157
      %s160 = sphi 0, %s159
      %s174 = sphi 0, %s160
      %s180 = sphi 0, %s182
      %s183 = sphi 0, %s180
      %s184 = sphi 0, %s183
      %s200 = sphi 0, %s184
    $region4: #{tpu_custom_call.1} parent=1 // loop_header_branch
      %21 = sbr.rel (%p19) target = $region8
    $region5: #{tpu_custom_call.1} parent=1 // loop_body
      %s23 = ssub.s32 %s18, 1
      %s24 = ssub.s32 %s18, 2
      %s25 = sadd.s32 %s18, 1
      %s26 = ssub.s32 %s18, %s25
      %p27 = scmp.eq.s32.totalorder %s26, 0
      %s29 = sadd.s32 %s28, 1
      %s30 = scalar_select %p27, %s28, %s29
      %p33 = pneg %p27
      %p34 = scmp.eq.s32.totalorder %s18, 1
      %p35 = por %p33, %p34
      %p36 = scmp.ne.s32.totalorder %s28, %s31
      %p37 = scmp.eq.s32.totalorder %s18, 0
      %p38 = por %p36, %p37
      %p39 = scmp.ne.s32.totalorder %s28, %s31
      %p40 = scmp.eq.s32.totalorder %s23, 1
      %p41 = por %p39, %p40
      %p42 = scmp.ne.s32.totalorder %s31, %s32
      %p43 = scmp.eq.s32.totalorder %s23, 0
      %p44 = por %p42, %p43
      %p45 = scmp.ne.s32.totalorder %s31, %s32
      %p46 = scmp.eq.s32.totalorder %s24, 1
      %p47 = por %p45, %p46
      %p49 = scmp.ne.s32.totalorder %s32, %s48
      %p50 = scmp.eq.s32.totalorder %s24, 0
      %p51 = por %p49, %p50
      %s53 = sadd.s32 %s52, 1
      %p56 = scmp.eq.s32.totalorder %s18, 1
      %p57 = scmp.ne.s32.totalorder %s52, %s54
      %p58 = scmp.eq.s32.totalorder %s18, 0
      %p59 = por %p57, %p58
      %p60 = scmp.ne.s32.totalorder %s52, %s54
      %p61 = scmp.eq.s32.totalorder %s23, 1
      %p62 = por %p60, %p61
      %p63 = scmp.ne.s32.totalorder %s54, %s55
      %p64 = scmp.eq.s32.totalorder %s23, 0
      %p65 = por %p63, %p64
      %p66 = scmp.ne.s32.totalorder %s54, %s55
      %p67 = scmp.eq.s32.totalorder %s24, 1
      %p68 = por %p66, %p67
      %p70 = scmp.ne.s32.totalorder %s55, %s69
      %p71 = scmp.eq.s32.totalorder %s24, 0
      %p72 = por %p70, %p71
      %s74 = sadd.s32 %s73, 1
      %p77 = scmp.eq.s32.totalorder %s18, 1
      %p78 = scmp.ne.s32.totalorder %s73, %s75
      %p79 = scmp.eq.s32.totalorder %s18, 0
      %p80 = por %p78, %p79
      %p81 = scmp.ne.s32.totalorder %s73, %s75
      %p82 = scmp.eq.s32.totalorder %s23, 1
      %p83 = por %p81, %p82
      %p84 = scmp.ne.s32.totalorder %s75, %s76
      %p85 = scmp.eq.s32.totalorder %s23, 0
      %p86 = por %p84, %p85
      %p87 = scmp.ne.s32.totalorder %s75, %s76
      %p88 = scmp.eq.s32.totalorder %s24, 1
      %p89 = por %p87, %p88
      %p91 = scmp.ne.s32.totalorder %s76, %s90
      %p92 = scmp.eq.s32.totalorder %s24, 0
      %p93 = por %p91, %p92
      %s95 = sadd.s32 %s94, 1
      %p98 = scmp.eq.s32.totalorder %s18, 1
      %p99 = scmp.ne.s32.totalorder %s94, %s96
      %p100 = scmp.eq.s32.totalorder %s18, 0
      %p101 = por %p99, %p100
      %p102 = scmp.ne.s32.totalorder %s94, %s96
      %p103 = scmp.eq.s32.totalorder %s23, 1
      %p104 = por %p102, %p103
      %p105 = scmp.ne.s32.totalorder %s96, %s97
      %p106 = scmp.eq.s32.totalorder %s23, 0
      %p107 = por %p105, %p106
      %p108 = scmp.ne.s32.totalorder %s96, %s97
      %p109 = scmp.eq.s32.totalorder %s24, 1
      %p110 = por %p108, %p109
      %p112 = scmp.ne.s32.totalorder %s97, %s111
      %p113 = scmp.eq.s32.totalorder %s24, 0
      %p114 = por %p112, %p113
      %s116 = sadd.s32 %s115, 1
      %p119 = scmp.eq.s32.totalorder %s18, 1
      %p120 = scmp.ne.s32.totalorder %s115, %s117
      %p121 = scmp.eq.s32.totalorder %s18, 0
      %p122 = por %p120, %p121
      %p123 = scmp.ne.s32.totalorder %s115, %s117
      %p124 = scmp.eq.s32.totalorder %s23, 1
      %p125 = por %p123, %p124
      %p126 = scmp.ne.s32.totalorder %s117, %s118
      %p127 = scmp.eq.s32.totalorder %s23, 0
      %p128 = por %p126, %p127
      %p129 = scmp.ne.s32.totalorder %s117, %s118
      %p130 = scmp.eq.s32.totalorder %s24, 1
      %p131 = por %p129, %p130
      %p133 = scmp.ne.s32.totalorder %s118, %s132
      %p134 = scmp.eq.s32.totalorder %s24, 0
      %p135 = por %p133, %p134
      %s137 = sadd.s32 %s136, 1
      %p140 = scmp.eq.s32.totalorder %s18, 1
      %p141 = scmp.ne.s32.totalorder %s136, %s138
      %p142 = scmp.eq.s32.totalorder %s18, 0
      %p143 = por %p141, %p142
      %p144 = scmp.ne.s32.totalorder %s136, %s138
      %p145 = scmp.eq.s32.totalorder %s23, 1
      %p146 = por %p144, %p145
      %p147 = scmp.ne.s32.totalorder %s138, %s139
      %p148 = scmp.eq.s32.totalorder %s23, 0
      %p149 = por %p147, %p148
      %p150 = scmp.ne.s32.totalorder %s138, %s139
      %p151 = scmp.eq.s32.totalorder %s24, 1
      %p152 = por %p150, %p151
      %p154 = scmp.ne.s32.totalorder %s139, %s153
      %p155 = scmp.eq.s32.totalorder %s24, 0
      %p156 = por %p154, %p155
      %s158 = sadd.s32 %s157, 1
      %p161 = scmp.eq.s32.totalorder %s18, 1
      %p162 = scmp.ne.s32.totalorder %s157, %s159
      %p163 = scmp.eq.s32.totalorder %s18, 0
      %p164 = por %p162, %p163
      %p165 = scmp.ne.s32.totalorder %s157, %s159
      %p166 = scmp.eq.s32.totalorder %s23, 1
      %p167 = por %p165, %p166
      %p168 = scmp.ne.s32.totalorder %s159, %s160
      %p169 = scmp.eq.s32.totalorder %s23, 0
      %p170 = por %p168, %p169
      %p171 = scmp.ne.s32.totalorder %s159, %s160
      %p172 = scmp.eq.s32.totalorder %s24, 1
      %p173 = por %p171, %p172
      %p175 = scmp.ne.s32.totalorder %s160, %s174
      %p176 = scmp.eq.s32.totalorder %s24, 0
      %p177 = por %p175, %p176
      %s178 = ssub.s32 %s18, %s25
      %p179 = scmp.eq.s32.totalorder %s178, 0
      %s181 = sadd.s32 %s180, 1
      %s182 = scalar_select %p179, %s180, %s181
      %p185 = pneg %p179
      %p186 = scmp.eq.s32.totalorder %s18, 1
      %p187 = por %p185, %p186
      %p188 = scmp.ne.s32.totalorder %s180, %s183
      %p189 = scmp.eq.s32.totalorder %s18, 0
      %p190 = por %p188, %p189
      %p191 = scmp.ne.s32.totalorder %s180, %s183
      %p192 = scmp.eq.s32.totalorder %s23, 1
      %p193 = por %p191, %p192
      %p194 = scmp.ne.s32.totalorder %s183, %s184
      %p195 = scmp.eq.s32.totalorder %s23, 0
      %p196 = por %p194, %p195
      %p197 = scmp.ne.s32.totalorder %s183, %s184
      %p198 = scmp.eq.s32.totalorder %s24, 1
      %p199 = por %p197, %p198
      %p201 = scmp.ne.s32.totalorder %s184, %s200
      %p202 = scmp.eq.s32.totalorder %s24, 0
      %p203 = por %p201, %p202
      %p204 = scmp.le.s32.totalorder 1, %s18
      %p205 = scmp.lt.s32.totalorder %s18, 3
      %p206 = pnand %p204, %p205
      %p207 = pneg %p206
      // Predicated region
      $region9: #{tpu_custom_call.1} parent=5 // pred_check
        _
      $region10: #{tpu_custom_call.1} parent=5 // pred_check_branch
        %209 = sbr.rel (%p206) target = $region12
      $region11: #{tpu_custom_call.1} parent=5 // pred_region
        %s210 = ssub.s32 %s18, 1
        // Predicated region
        $region13: #{tpu_custom_call.1} parent=11 // pred_check
          %p211 = pneg %p65
        $region14: #{tpu_custom_call.1} parent=11 // pred_check_branch
          %213 = sbr.rel (%p211) target = $region16
        $region15: #{tpu_custom_call.1} parent=11 // pred_region
          _
        $region16: #{tpu_custom_call.1} parent=11 // pred_fallthru
          _
        // Predicated region
        $region17: #{tpu_custom_call.1} parent=11 // pred_check
          %p214 = pneg %p86
        $region18: #{tpu_custom_call.1} parent=11 // pred_check_branch
          %216 = sbr.rel (%p214) target = $region20
        $region19: #{tpu_custom_call.1} parent=11 // pred_region
          _
        $region20: #{tpu_custom_call.1} parent=11 // pred_fallthru
          _
        // Predicated region
        $region21: #{tpu_custom_call.1} parent=11 // pred_check
          %p217 = pneg %p107
        $region22: #{tpu_custom_call.1} parent=11 // pred_check_branch
          %219 = sbr.rel (%p217) target = $region24
        $region23: #{tpu_custom_call.1} parent=11 // pred_region
          _
        $region24: #{tpu_custom_call.1} parent=11 // pred_fallthru
          _
        // Predicated region
        $region25: #{tpu_custom_call.1} parent=11 // pred_check
          %p220 = pneg %p128
        $region26: #{tpu_custom_call.1} parent=11 // pred_check_branch
          %222 = sbr.rel (%p220) target = $region28
        $region27: #{tpu_custom_call.1} parent=11 // pred_region
          _
        $region28: #{tpu_custom_call.1} parent=11 // pred_fallthru
          _
        // Predicated region
        $region29: #{tpu_custom_call.1} parent=11 // pred_check
          %p223 = pneg %p149
        $region30: #{tpu_custom_call.1} parent=11 // pred_check_branch
          %225 = sbr.rel (%p223) target = $region32
        $region31: #{tpu_custom_call.1} parent=11 // pred_region
          _
        $region32: #{tpu_custom_call.1} parent=11 // pred_fallthru
          _
        // Predicated region
        $region33: #{tpu_custom_call.1} parent=11 // pred_check
          %p226 = pneg %p170
        $region34: #{tpu_custom_call.1} parent=11 // pred_check_branch
          %228 = sbr.rel (%p226) target = $region36
        $region35: #{tpu_custom_call.1} parent=11 // pred_region
          _
        $region36: #{tpu_custom_call.1} parent=11 // pred_fallthru
          _
      $region12: #{tpu_custom_call.1} parent=5 // pred_fallthru
        _
      %p229 = scmp.lt.s32.totalorder %s18, 2
      // Predicated region
      $region37: #{tpu_custom_call.1} parent=5 // pred_check
        %p230 = pneg %p229
      $region38: #{tpu_custom_call.1} parent=5 // pred_check_branch
        %232 = sbr.rel (%p230) target = $region40
      $region39: #{tpu_custom_call.1} parent=5 // pred_region
        // Predicated region
        $region41: #{tpu_custom_call.1} parent=39 // pred_check
          %p233 = pneg %p38
        $region42: #{tpu_custom_call.1} parent=39 // pred_check_branch
          %235 = sbr.rel (%p233) target = $region44
        $region43: #{tpu_custom_call.1} parent=39 // pred_region
          %s236 = smul.u32 128, %s18
          %s237 = ssub.s32 250, %s236
          %p238 = scmp.lt.s32.totalorder %s237, 128
          %s239 = scalar_select %p238, %s237, 128
          %s240 = smul.u32 128, %s239
          %p241 = scmp.lt.s32.totalorder %s236, 249
          %s242 = scalar_select %p241, %s236, 249
          %s243 = smul.addr %s242, 8
          %s244 = scalar_lea.vmem %s0, %s243
          %s245 = smul.u32 128, %s18
          %s246 = ssub.s32 250, %s245
          %p247 = scmp.lt.s32.totalorder %s246, 128
          %s248 = scalar_select %p247, %s246, 128
          %s249 = smul.u32 128, %s248
        $region44: #{tpu_custom_call.1} parent=39 // pred_fallthru
          _
      $region40: #{tpu_custom_call.1} parent=5 // pred_fallthru
        _
      %p250 = scmp.le.s32.totalorder 1, %s18
      %p251 = scmp.lt.s32.totalorder %s18, 3
      %p252 = pnand %p250, %p251
      %p253 = pneg %p252
      // Predicated region
      $region45: #{tpu_custom_call.1} parent=5 // pred_check
        _
      $region46: #{tpu_custom_call.1} parent=5 // pred_check_branch
        %255 = sbr.rel (%p252) target = $region48
      $region47: #{tpu_custom_call.1} parent=5 // pred_region
        %s256 = ssub.s32 %s18, 1
        %s257 = smul.u32 128, %s23
        %s258 = ssub.s32 250, %s257
        %p259 = scmp.lt.s32.totalorder %s258, 128
        %s260 = scalar_select %p259, %s258, 128
        %s261 = smul.u32 128, %s260
        %p262 = scmp.lt.s32.totalorder %s257, 249
        %s263 = scalar_select %p262, %s257, 249
        %s264 = smul.addr %s263, 8
        %s265 = scalar_lea.vmem %s0, %s264
        %p266 = pneg %p44
        %p267 = pneg %p41
        %p268 = pneg %p65
        %p269 = pneg %p62
        %p270 = pneg %p86
        %p271 = pneg %p83
        %p272 = pneg %p107
        %p273 = pneg %p104
        %p274 = pneg %p128
        %p275 = pneg %p125
        %p276 = pneg %p149
        %p277 = pneg %p146
        %p278 = pneg %p170
        %p279 = pneg %p167
        %p280 = pneg %p196
        %p281 = pneg %p193
        %s282 = sand.u32 %s183, 1
        %s283 = scalar_lea.sflag [#allocation4], %s282
        %s284 = sand.u32 %s183, 1
        %s285 = smul.addr %s284, 8
        %s286 = scalar_lea.vmem [#allocation3], %s285
        %s287 = smul.u32 128, %s23
        %s288 = ssub.s32 250, %s287
        %p289 = scmp.lt.s32.totalorder %s288, 128
        %s290 = scalar_select %p289, %s288, 128
        %s291 = smul.u32 128, %s290
        %p292 = scmp.lt.s32.totalorder %s287, 249
        %s293 = scalar_select %p292, %s287, 249
        %s294 = smul.addr %s293, 8
        %s295 = scalar_lea.vmem %s0, %s294
        %s296 = smul.u32 128, %s23
        %s297 = ssub.s32 250, %s296
        %p298 = scmp.lt.s32.totalorder %s297, 128
        %s299 = scalar_select %p298, %s297, 128
        %s300 = smul.u32 128, %s299
        %s301 = smul.u32 8, %s23
        %v302 = vld [vmem:[%s295] sm:$0xff]
        %v303 = vld [vmem:[%s295 + $0x8] sm:$0xff]
        %v304 = vld [vmem:[%s295 + $0x10] sm:$0xff]
        %v305 = vld [vmem:[%s295 + $0x18] sm:$0xff]
        %v306 = vld [vmem:[%s295 + $0x20] sm:$0xff]
        %v307 = vld [vmem:[%s295 + $0x28] sm:$0xff]
        %v308 = vld [vmem:[%s295 + $0x30] sm:$0xff]
        %v309 = vld [vmem:[%s295 + $0x38] sm:$0xff]
        %v310 = vld [vmem:[%s295 + $0x40] sm:$0xff]
        %v311 = vld [vmem:[%s295 + $0x48] sm:$0xff]
        %v312 = vld [vmem:[%s295 + $0x50] sm:$0xff]
        %v313 = vld [vmem:[%s295 + $0x58] sm:$0xff]
        %v314 = vld [vmem:[%s295 + $0x60] sm:$0xff]
        %v315 = vld [vmem:[%s295 + $0x68] sm:$0xff]
        %v316 = vld [vmem:[%s295 + $0x70] sm:$0xff]
        %v317 = vld [vmem:[%s295 + $0x78] sm:$0xff]
        %v318 = vld [vmem:[%s295 + $0x80] sm:$0xff]
        %v319 = vld [vmem:[%s295 + $0x88] sm:$0xff]
        %v320 = vld [vmem:[%s295 + $0x90] sm:$0xff]
        %v321 = vld [vmem:[%s295 + $0x98] sm:$0xff]
        %v322 = vld [vmem:[%s295 + $0xa0] sm:$0xff]
        %v323 = vld [vmem:[%s295 + $0xa8] sm:$0xff]
        %v324 = vld [vmem:[%s295 + $0xb0] sm:$0xff]
        %v325 = vld [vmem:[%s295 + $0xb8] sm:$0xff]
        %v326 = vld [vmem:[%s295 + $0xc0] sm:$0xff]
        %v327 = vld [vmem:[%s295 + $0xc8] sm:$0xff]
        %v328 = vld [vmem:[%s295 + $0xd0] sm:$0xff]
        %v329 = vld [vmem:[%s295 + $0xd8] sm:$0xff]
        %v330 = vld [vmem:[%s295 + $0xe0] sm:$0xff]
        %v331 = vld [vmem:[%s295 + $0xe8] sm:$0xff]
        %v332 = vld [vmem:[%s295 + $0xf0] sm:$0xff]
        %v333 = vld [vmem:[%s295 + $0xf8] sm:$0xff]
        %v334 = vld [vmem:[%s295 + $0x100] sm:$0xff]
        %v335 = vld [vmem:[%s295 + $0x108] sm:$0xff]
        %v336 = vld [vmem:[%s295 + $0x110] sm:$0xff]
        %v337 = vld [vmem:[%s295 + $0x118] sm:$0xff]
        %v338 = vld [vmem:[%s295 + $0x120] sm:$0xff]
        %v339 = vld [vmem:[%s295 + $0x128] sm:$0xff]
        %v340 = vld [vmem:[%s295 + $0x130] sm:$0xff]
        %v341 = vld [vmem:[%s295 + $0x138] sm:$0xff]
        %v342 = vld [vmem:[%s295 + $0x140] sm:$0xff]
        %v343 = vld [vmem:[%s295 + $0x148] sm:$0xff]
        %v344 = vld [vmem:[%s295 + $0x150] sm:$0xff]
        %v345 = vld [vmem:[%s295 + $0x158] sm:$0xff]
        %v346 = vld [vmem:[%s295 + $0x160] sm:$0xff]
        %v347 = vld [vmem:[%s295 + $0x168] sm:$0xff]
        %v348 = vld [vmem:[%s295 + $0x170] sm:$0xff]
        %v349 = vld [vmem:[%s295 + $0x178] sm:$0xff]
        %v350 = vld [vmem:[%s295 + $0x180] sm:$0xff]
        %v351 = vld [vmem:[%s295 + $0x188] sm:$0xff]
        %v352 = vld [vmem:[%s295 + $0x190] sm:$0xff]
        %v353 = vld [vmem:[%s295 + $0x198] sm:$0xff]
        %v354 = vld [vmem:[%s295 + $0x1a0] sm:$0xff]
        %v355 = vld [vmem:[%s295 + $0x1a8] sm:$0xff]
        %v356 = vld [vmem:[%s295 + $0x1b0] sm:$0xff]
        %v357 = vld [vmem:[%s295 + $0x1b8] sm:$0xff]
        %v358 = vld [vmem:[%s295 + $0x1c0] sm:$0xff]
        %v359 = vld [vmem:[%s295 + $0x1c8] sm:$0xff]
        %v360 = vld [vmem:[%s295 + $0x1d0] sm:$0xff]
        %v361 = vld [vmem:[%s295 + $0x1d8] sm:$0xff]
        %v362 = vld [vmem:[%s295 + $0x1e0] sm:$0xff]
        %v363 = vld [vmem:[%s295 + $0x1e8] sm:$0xff]
        %v364 = vld [vmem:[%s295 + $0x1f0] sm:$0xff]
        %v365 = vld [vmem:[%s295 + $0x1f8] sm:$0xff]
        %v366 = vld [vmem:[%s295 + $0x200] sm:$0xff]
        %v367 = vld [vmem:[%s295 + $0x208] sm:$0xff]
        %v368 = vld [vmem:[%s295 + $0x210] sm:$0xff]
        %v369 = vld [vmem:[%s295 + $0x218] sm:$0xff]
        %v370 = vld [vmem:[%s295 + $0x220] sm:$0xff]
        %v371 = vld [vmem:[%s295 + $0x228] sm:$0xff]
        %v372 = vld [vmem:[%s295 + $0x230] sm:$0xff]
        %v373 = vld [vmem:[%s295 + $0x238] sm:$0xff]
        %v374 = vld [vmem:[%s295 + $0x240] sm:$0xff]
        %v375 = vld [vmem:[%s295 + $0x248] sm:$0xff]
        %v376 = vld [vmem:[%s295 + $0x250] sm:$0xff]
        %v377 = vld [vmem:[%s295 + $0x258] sm:$0xff]
        %v378 = vld [vmem:[%s295 + $0x260] sm:$0xff]
        %v379 = vld [vmem:[%s295 + $0x268] sm:$0xff]
        %v380 = vld [vmem:[%s295 + $0x270] sm:$0xff]
        %v381 = vld [vmem:[%s295 + $0x278] sm:$0xff]
        %v382 = vld [vmem:[%s295 + $0x280] sm:$0xff]
        %v383 = vld [vmem:[%s295 + $0x288] sm:$0xff]
        %v384 = vld [vmem:[%s295 + $0x290] sm:$0xff]
        %v385 = vld [vmem:[%s295 + $0x298] sm:$0xff]
        %v386 = vld [vmem:[%s295 + $0x2a0] sm:$0xff]
        %v387 = vld [vmem:[%s295 + $0x2a8] sm:$0xff]
        %v388 = vld [vmem:[%s295 + $0x2b0] sm:$0xff]
        %v389 = vld [vmem:[%s295 + $0x2b8] sm:$0xff]
        %v390 = vld [vmem:[%s295 + $0x2c0] sm:$0xff]
        %v391 = vld [vmem:[%s295 + $0x2c8] sm:$0xff]
        %v392 = vld [vmem:[%s295 + $0x2d0] sm:$0xff]
        %v393 = vld [vmem:[%s295 + $0x2d8] sm:$0xff]
        %v394 = vld [vmem:[%s295 + $0x2e0] sm:$0xff]
        %v395 = vld [vmem:[%s295 + $0x2e8] sm:$0xff]
        %v396 = vld [vmem:[%s295 + $0x2f0] sm:$0xff]
        %v397 = vld [vmem:[%s295 + $0x2f8] sm:$0xff]
        %v398 = vld [vmem:[%s295 + $0x300] sm:$0xff]
        %v399 = vld [vmem:[%s295 + $0x308] sm:$0xff]
        %v400 = vld [vmem:[%s295 + $0x310] sm:$0xff]
        %v401 = vld [vmem:[%s295 + $0x318] sm:$0xff]
        %v402 = vld [vmem:[%s295 + $0x320] sm:$0xff]
        %v403 = vld [vmem:[%s295 + $0x328] sm:$0xff]
        %v404 = vld [vmem:[%s295 + $0x330] sm:$0xff]
        %v405 = vld [vmem:[%s295 + $0x338] sm:$0xff]
        %v406 = vld [vmem:[%s295 + $0x340] sm:$0xff]
        %v407 = vld [vmem:[%s295 + $0x348] sm:$0xff]
        %v408 = vld [vmem:[%s295 + $0x350] sm:$0xff]
        %v409 = vld [vmem:[%s295 + $0x358] sm:$0xff]
        %v410 = vld [vmem:[%s295 + $0x360] sm:$0xff]
        %v411 = vld [vmem:[%s295 + $0x368] sm:$0xff]
        %v412 = vld [vmem:[%s295 + $0x370] sm:$0xff]
        %v413 = vld [vmem:[%s295 + $0x378] sm:$0xff]
        %v414 = vld [vmem:[%s295 + $0x380] sm:$0xff]
        %v415 = vld [vmem:[%s295 + $0x388] sm:$0xff]
        %v416 = vld [vmem:[%s295 + $0x390] sm:$0xff]
        %v417 = vld [vmem:[%s295 + $0x398] sm:$0xff]
        %v418 = vld [vmem:[%s295 + $0x3a0] sm:$0xff]
        %v419 = vld [vmem:[%s295 + $0x3a8] sm:$0xff]
        %v420 = vld [vmem:[%s295 + $0x3b0] sm:$0xff]
        %v421 = vld [vmem:[%s295 + $0x3b8] sm:$0xff]
        %v422 = vld [vmem:[%s295 + $0x3c0] sm:$0xff]
        %v423 = vld [vmem:[%s295 + $0x3c8] sm:$0xff]
        %v424 = vld [vmem:[%s295 + $0x3d0] sm:$0xff]
        %v425 = vld [vmem:[%s295 + $0x3d8] sm:$0xff]
        %v426 = vld [vmem:[%s295 + $0x3e0] sm:$0xff]
        %v427 = vld [vmem:[%s295 + $0x3e8] sm:$0xff]
        %v428 = vld [vmem:[%s295 + $0x3f0] sm:$0xff]
        %v429 = vld [vmem:[%s295 + $0x3f8] sm:$0xff]
        %v430 = vld [vmem:[%s1] sm:$0xff]
        %v431 = vld [vmem:[%s1 + $0x8] sm:$0xff]
        %v432 = vld [vmem:[%s1 + $0x10] sm:$0xff]
        %v433 = vld [vmem:[%s1 + $0x18] sm:$0xff]
        %v434 = vld [vmem:[%s2] sm:$0xff]
        %v435 = vld [vmem:[%s2 + $0x8] sm:$0xff]
        %v436 = vld [vmem:[%s2 + $0x10] sm:$0xff]
        %v437 = vld [vmem:[%s2 + $0x18] sm:$0xff]
        %439 = vset.pattern.permute.xlu0 0
        %440 = vperm.xlu0 %439, %v434
        %v441 = vpop.permute.xlu0 %440
        %444 = vset.pattern.permute.xlu0 0
        %445 = vperm.xlu0 %444, %v435
        %v446 = vpop.permute.xlu0 %445
        %449 = vset.pattern.permute.xlu0 0
        %450 = vperm.xlu0 %449, %v436
        %v451 = vpop.permute.xlu0 %450
        %454 = vset.pattern.permute.xlu0 0
        %455 = vperm.xlu0 %454, %v437
        %v456 = vpop.permute.xlu0 %455
        %vm458 = vcmask 130048
        %v460 = vsel %vm458, %v430, 0
        %v463 = vsel %vm458, %v431, 0
        %v466 = vsel %vm458, %v432, 0
        %v469 = vsel %vm458, %v433, 0
        %v472 = vsel %vm458, %v302, 0
        %v475 = vsel %vm458, %v303, 0
        %v478 = vsel %vm458, %v304, 0
        %v481 = vsel %vm458, %v305, 0
        %v484 = vsel %vm458, %v306, 0
        %v487 = vsel %vm458, %v307, 0
        %v490 = vsel %vm458, %v308, 0
        %v493 = vsel %vm458, %v309, 0
        %v496 = vsel %vm458, %v310, 0
        %v499 = vsel %vm458, %v311, 0
        %v502 = vsel %vm458, %v312, 0
        %v505 = vsel %vm458, %v313, 0
        %v508 = vsel %vm458, %v314, 0
        %v511 = vsel %vm458, %v315, 0
        %v514 = vsel %vm458, %v316, 0
        %v517 = vsel %vm458, %v317, 0
        %v520 = vsel %vm458, %v318, 0
        %v523 = vsel %vm458, %v319, 0
        %v526 = vsel %vm458, %v320, 0
        %v529 = vsel %vm458, %v321, 0
        %v532 = vsel %vm458, %v322, 0
        %v535 = vsel %vm458, %v323, 0
        %v538 = vsel %vm458, %v324, 0
        %v541 = vsel %vm458, %v325, 0
        %v544 = vsel %vm458, %v326, 0
        %v547 = vsel %vm458, %v327, 0
        %v550 = vsel %vm458, %v328, 0
        %v553 = vsel %vm458, %v329, 0
        %v556 = vsel %vm458, %v330, 0
        %v559 = vsel %vm458, %v331, 0
        %v562 = vsel %vm458, %v332, 0
        %v565 = vsel %vm458, %v333, 0
        %v568 = vsel %vm458, %v334, 0
        %v571 = vsel %vm458, %v335, 0
        %v574 = vsel %vm458, %v336, 0
        %v577 = vsel %vm458, %v337, 0
        %v580 = vsel %vm458, %v338, 0
        %v583 = vsel %vm458, %v339, 0
        %v586 = vsel %vm458, %v340, 0
        %v589 = vsel %vm458, %v341, 0
        %v592 = vsel %vm458, %v342, 0
        %v595 = vsel %vm458, %v343, 0
        %v598 = vsel %vm458, %v344, 0
        %v601 = vsel %vm458, %v345, 0
        %v604 = vsel %vm458, %v346, 0
        %v607 = vsel %vm458, %v347, 0
        %v610 = vsel %vm458, %v348, 0
        %v613 = vsel %vm458, %v349, 0
        %v616 = vsel %vm458, %v350, 0
        %v619 = vsel %vm458, %v351, 0
        %v622 = vsel %vm458, %v352, 0
        %v625 = vsel %vm458, %v353, 0
        %v628 = vsel %vm458, %v354, 0
        %v631 = vsel %vm458, %v355, 0
        %v634 = vsel %vm458, %v356, 0
        %v637 = vsel %vm458, %v357, 0
        %v640 = vsel %vm458, %v358, 0
        %v643 = vsel %vm458, %v359, 0
        %v646 = vsel %vm458, %v360, 0
        %v649 = vsel %vm458, %v361, 0
        %v652 = vsel %vm458, %v362, 0
        %v655 = vsel %vm458, %v363, 0
        %v658 = vsel %vm458, %v364, 0
        %v661 = vsel %vm458, %v365, 0
        %v664 = vsel %vm458, %v366, 0
        %v667 = vsel %vm458, %v367, 0
        %v670 = vsel %vm458, %v368, 0
        %v673 = vsel %vm458, %v369, 0
        %v676 = vsel %vm458, %v370, 0
        %v679 = vsel %vm458, %v371, 0
        %v682 = vsel %vm458, %v372, 0
        %v685 = vsel %vm458, %v373, 0
        %v688 = vsel %vm458, %v374, 0
        %v691 = vsel %vm458, %v375, 0
        %v694 = vsel %vm458, %v376, 0
        %v697 = vsel %vm458, %v377, 0
        %v700 = vsel %vm458, %v378, 0
        %v703 = vsel %vm458, %v379, 0
        %v706 = vsel %vm458, %v380, 0
        %v709 = vsel %vm458, %v381, 0
        %v712 = vsel %vm458, %v382, 0
        %v715 = vsel %vm458, %v383, 0
        %v718 = vsel %vm458, %v384, 0
        %v721 = vsel %vm458, %v385, 0
        %v724 = vsel %vm458, %v386, 0
        %v727 = vsel %vm458, %v387, 0
        %v730 = vsel %vm458, %v388, 0
        %v733 = vsel %vm458, %v389, 0
        %v736 = vsel %vm458, %v390, 0
        %v739 = vsel %vm458, %v391, 0
        %v742 = vsel %vm458, %v392, 0
        %v745 = vsel %vm458, %v393, 0
        %v748 = vsel %vm458, %v394, 0
        %v751 = vsel %vm458, %v395, 0
        %v754 = vsel %vm458, %v396, 0
        %v757 = vsel %vm458, %v397, 0
        %v760 = vsel %vm458, %v398, 0
        %v763 = vsel %vm458, %v399, 0
        %v766 = vsel %vm458, %v400, 0
        %v769 = vsel %vm458, %v401, 0
        %v772 = vsel %vm458, %v402, 0
        %v775 = vsel %vm458, %v403, 0
        %v778 = vsel %vm458, %v404, 0
        %v781 = vsel %vm458, %v405, 0
        %v784 = vsel %vm458, %v406, 0
        %v787 = vsel %vm458, %v407, 0
        %v790 = vsel %vm458, %v408, 0
        %v793 = vsel %vm458, %v409, 0
        %v796 = vsel %vm458, %v410, 0
        %v799 = vsel %vm458, %v411, 0
        %v802 = vsel %vm458, %v412, 0
        %v805 = vsel %vm458, %v413, 0
        %v808 = vsel %vm458, %v414, 0
        %v811 = vsel %vm458, %v415, 0
        %v814 = vsel %vm458, %v416, 0
        %v817 = vsel %vm458, %v417, 0
        %v820 = vsel %vm458, %v418, 0
        %v823 = vsel %vm458, %v419, 0
        %v826 = vsel %vm458, %v420, 0
        %v829 = vsel %vm458, %v421, 0
        %v832 = vsel %vm458, %v422, 0
        %v835 = vsel %vm458, %v423, 0
        %v838 = vsel %vm458, %v424, 0
        %v841 = vsel %vm458, %v425, 0
        %v844 = vsel %vm458, %v426, 0
        %v847 = vsel %vm458, %v427, 0
        %v850 = vsel %vm458, %v428, 0
        %v853 = vsel %vm458, %v429, 0
        %855 = vmatprep.subr.mxu0 0.0
        %856 = vmatpush1.xpose.msra.mxu0 %v472
        %857 = vmatprep.subr.mxu0 0.0
        %858 = vmatpush1.xpose.msra.mxu0 %v475
        %859 = vmatprep.subr.mxu0 0.0
        %860 = vmatpush1.xpose.msra.mxu0 %v478
        %861 = vmatprep.subr.mxu0 0.0
        %862 = vmatpush1.xpose.msra.mxu0 %v481
        %863 = vmatprep.subr.mxu0 0.0
        %864 = vmatpush1.xpose.msra.mxu0 %v484
        %865 = vmatprep.subr.mxu0 0.0
        %866 = vmatpush1.xpose.msra.mxu0 %v487
        %867 = vmatprep.subr.mxu0 0.0
        %868 = vmatpush1.xpose.msra.mxu0 %v490
        %869 = vmatprep.subr.mxu0 0.0
        %870 = vmatpush1.xpose.msra.mxu0 %v493
        %871 = vmatprep.subr.mxu0 0.0
        %872 = vmatpush1.xpose.msra.mxu0 %v496
        %873 = vmatprep.subr.mxu0 0.0
        %874 = vmatpush1.xpose.msra.mxu0 %v499
        %875 = vmatprep.subr.mxu0 0.0
        %876 = vmatpush1.xpose.msra.mxu0 %v502
        %877 = vmatprep.subr.mxu0 0.0
        %878 = vmatpush1.xpose.msra.mxu0 %v505
        %879 = vmatprep.subr.mxu0 0.0
        %880 = vmatpush1.xpose.msra.mxu0 %v508
        %881 = vmatprep.subr.mxu0 0.0
        %882 = vmatpush1.xpose.msra.mxu0 %v511
        %883 = vmatprep.subr.mxu0 0.0
        %884 = vmatpush1.xpose.msra.mxu0 %v514
        %885 = vmatprep.subr.mxu0 0.0
        %886 = vmatpush1.xpose.msra.mxu0 %v517
        %887 = vmatprep.subr.mxu0 0.0
        %888 = vmatpush1.xpose.msra.mxu0 %v520
        %889 = vmatprep.subr.mxu0 0.0
        %890 = vmatpush1.xpose.msra.mxu0 %v523
        %891 = vmatprep.subr.mxu0 0.0
        %892 = vmatpush1.xpose.msra.mxu0 %v526
        %893 = vmatprep.subr.mxu0 0.0
        %894 = vmatpush1.xpose.msra.mxu0 %v529
        %895 = vmatprep.subr.mxu0 0.0
        %896 = vmatpush1.xpose.msra.mxu0 %v532
        %897 = vmatprep.subr.mxu0 0.0
        %898 = vmatpush1.xpose.msra.mxu0 %v535
        %899 = vmatprep.subr.mxu0 0.0
        %900 = vmatpush1.xpose.msra.mxu0 %v538
        %901 = vmatprep.subr.mxu0 0.0
        %902 = vmatpush1.xpose.msra.mxu0 %v541
        %903 = vmatprep.subr.mxu0 0.0
        %904 = vmatpush1.xpose.msra.mxu0 %v544
        %905 = vmatprep.subr.mxu0 0.0
        %906 = vmatpush1.xpose.msra.mxu0 %v547
        %907 = vmatprep.subr.mxu0 0.0
        %908 = vmatpush1.xpose.msra.mxu0 %v550
        %909 = vmatprep.subr.mxu0 0.0
        %910 = vmatpush1.xpose.msra.mxu0 %v553
        %911 = vmatprep.subr.mxu0 0.0
        %912 = vmatpush1.xpose.msra.mxu0 %v556
        %913 = vmatprep.subr.mxu0 0.0
        %914 = vmatpush1.xpose.msra.mxu0 %v559
        %915 = vmatprep.subr.mxu0 0.0
        %916 = vmatpush1.xpose.msra.mxu0 %v562
        %917 = vmatprep.subr.mxu0 0.0
        %918 = vmatpush1.xpose.msra.mxu0 %v565
        %919 = vmatprep.mubr.f32.mxu0 0.0
        %920 = vmatmul.mubr.f32.gmra.mrb[0].mxu0 %v460
        %v921 = vpop.f32.mrb[0].mxu0
        %v922 = vadd.f32 %v441, %v921
        %v923 = vpop.f32.mrb[0].mxu0
        %v924 = vadd.f32 %v441, %v923
        %925 = vmatprep.mubr.f32.mxu0 0.0
        %926 = vmatmul.mubr.f32.gmra.mrb[0].mxu0 %v463
        %v927 = vpop.f32.mrb[0].mxu0
        %v928 = vadd.f32 %v446, %v927
        %v929 = vpop.f32.mrb[0].mxu0
        %v930 = vadd.f32 %v446, %v929
        %931 = vmatprep.mubr.f32.mxu0 0.0
        %932 = vmatmul.mubr.f32.gmra.mrb[0].mxu0 %v466
        %v933 = vpop.f32.mrb[0].mxu0
        %v934 = vadd.f32 %v451, %v933
        %v935 = vpop.f32.mrb[0].mxu0
        %v936 = vadd.f32 %v451, %v935
        %937 = vmatprep.mubr.f32.mxu0 0.0
        %938 = vmatmul.mubr.f32.gmra.mrb[0].mxu0 %v469
        %v939 = vpop.f32.mrb[0].mxu0
        %v940 = vadd.f32 %v456, %v939
        %v941 = vpop.f32.mrb[0].mxu0
        %v942 = vadd.f32 %v456, %v941
        %943 = vdwg.mxu0
        %944 = vmatprep.subr.mxu0 0.0
        %945 = vmatpush1.xpose.msra.mxu0 %v568
        %946 = vmatprep.subr.mxu0 0.0
        %947 = vmatpush1.xpose.msra.mxu0 %v571
        %948 = vmatprep.subr.mxu0 0.0
        %949 = vmatpush1.xpose.msra.mxu0 %v574
        %950 = vmatprep.subr.mxu0 0.0
        %951 = vmatpush1.xpose.msra.mxu0 %v577
        %952 = vmatprep.subr.mxu0 0.0
        %953 = vmatpush1.xpose.msra.mxu0 %v580
        %954 = vmatprep.subr.mxu0 0.0
        %955 = vmatpush1.xpose.msra.mxu0 %v583
        %956 = vmatprep.subr.mxu0 0.0
        %957 = vmatpush1.xpose.msra.mxu0 %v586
        %958 = vmatprep.subr.mxu0 0.0
        %959 = vmatpush1.xpose.msra.mxu0 %v589
        %960 = vmatprep.subr.mxu0 0.0
        %961 = vmatpush1.xpose.msra.mxu0 %v592
        %962 = vmatprep.subr.mxu0 0.0
        %963 = vmatpush1.xpose.msra.mxu0 %v595
        %964 = vmatprep.subr.mxu0 0.0
        %965 = vmatpush1.xpose.msra.mxu0 %v598
        %966 = vmatprep.subr.mxu0 0.0
        %967 = vmatpush1.xpose.msra.mxu0 %v601
        %968 = vmatprep.subr.mxu0 0.0
        %969 = vmatpush1.xpose.msra.mxu0 %v604
        %970 = vmatprep.subr.mxu0 0.0
        %971 = vmatpush1.xpose.msra.mxu0 %v607
        %972 = vmatprep.subr.mxu0 0.0
        %973 = vmatpush1.xpose.msra.mxu0 %v610
        %974 = vmatprep.subr.mxu0 0.0
        %975 = vmatpush1.xpose.msra.mxu0 %v613
        %976 = vmatprep.subr.mxu0 0.0
        %977 = vmatpush1.xpose.msra.mxu0 %v616
        %978 = vmatprep.subr.mxu0 0.0
        %979 = vmatpush1.xpose.msra.mxu0 %v619
        %980 = vmatprep.subr.mxu0 0.0
        %981 = vmatpush1.xpose.msra.mxu0 %v622
        %982 = vmatprep.subr.mxu0 0.0
        %983 = vmatpush1.xpose.msra.mxu0 %v625
        %984 = vmatprep.subr.mxu0 0.0
        %985 = vmatpush1.xpose.msra.mxu0 %v628
        %986 = vmatprep.subr.mxu0 0.0
        %987 = vmatpush1.xpose.msra.mxu0 %v631
        %988 = vmatprep.subr.mxu0 0.0
        %989 = vmatpush1.xpose.msra.mxu0 %v634
        %990 = vmatprep.subr.mxu0 0.0
        %991 = vmatpush1.xpose.msra.mxu0 %v637
        %992 = vmatprep.subr.mxu0 0.0
        %993 = vmatpush1.xpose.msra.mxu0 %v640
        %994 = vmatprep.subr.mxu0 0.0
        %995 = vmatpush1.xpose.msra.mxu0 %v643
        %996 = vmatprep.subr.mxu0 0.0
        %997 = vmatpush1.xpose.msra.mxu0 %v646
        %998 = vmatprep.subr.mxu0 0.0
        %999 = vmatpush1.xpose.msra.mxu0 %v649
        %1000 = vmatprep.subr.mxu0 0.0
        %1001 = vmatpush1.xpose.msra.mxu0 %v652
        %1002 = vmatprep.subr.mxu0 0.0
        %1003 = vmatpush1.xpose.msra.mxu0 %v655
        %1004 = vmatprep.subr.mxu0 0.0
        %1005 = vmatpush1.xpose.msra.mxu0 %v658
        %1006 = vmatprep.subr.mxu0 0.0
        %1007 = vmatpush1.xpose.msra.mxu0 %v661
        %1008 = vmatprep.mubr.f32.mxu0 0.0
        %1009 = vmatmul.mubr.f32.gmra.mrb[0].mxu0 %v460
        %v1010 = vpop.f32.mrb[0].mxu0
        %v1011 = vadd.f32 %v441, %v1010
        %v1012 = vpop.f32.mrb[0].mxu0
        %v1013 = vadd.f32 %v441, %v1012
        %1014 = vmatprep.mubr.f32.mxu0 0.0
        %1015 = vmatmul.mubr.f32.gmra.mrb[0].mxu0 %v463
        %v1016 = vpop.f32.mrb[0].mxu0
        %v1017 = vadd.f32 %v446, %v1016
        %v1018 = vpop.f32.mrb[0].mxu0
        %v1019 = vadd.f32 %v446, %v1018
        %1020 = vmatprep.mubr.f32.mxu0 0.0
        %1021 = vmatmul.mubr.f32.gmra.mrb[0].mxu0 %v466
        %v1022 = vpop.f32.mrb[0].mxu0
        %v1023 = vadd.f32 %v451, %v1022
        %v1024 = vpop.f32.mrb[0].mxu0
        %v1025 = vadd.f32 %v451, %v1024
        %1026 = vmatprep.mubr.f32.mxu0 0.0
        %1027 = vmatmul.mubr.f32.gmra.mrb[0].mxu0 %v469
        %v1028 = vpop.f32.mrb[0].mxu0
        %v1029 = vadd.f32 %v456, %v1028
        %v1030 = vpop.f32.mrb[0].mxu0
        %v1031 = vadd.f32 %v456, %v1030
        %1032 = vdwg.mxu0
        %1033 = vmatprep.subr.mxu0 0.0
        %1034 = vmatpush1.xpose.msra.mxu0 %v664
        %1035 = vmatprep.subr.mxu0 0.0
        %1036 = vmatpush1.xpose.msra.mxu0 %v667
        %1037 = vmatprep.subr.mxu0 0.0
        %1038 = vmatpush1.xpose.msra.mxu0 %v670
        %1039 = vmatprep.subr.mxu0 0.0
        %1040 = vmatpush1.xpose.msra.mxu0 %v673
        %1041 = vmatprep.subr.mxu0 0.0
        %1042 = vmatpush1.xpose.msra.mxu0 %v676
        %1043 = vmatprep.subr.mxu0 0.0
        %1044 = vmatpush1.xpose.msra.mxu0 %v679
        %1045 = vmatprep.subr.mxu0 0.0
        %1046 = vmatpush1.xpose.msra.mxu0 %v682
        %1047 = vmatprep.subr.mxu0 0.0
        %1048 = vmatpush1.xpose.msra.mxu0 %v685
        %1049 = vmatprep.subr.mxu0 0.0
        %1050 = vmatpush1.xpose.msra.mxu0 %v688
        %1051 = vmatprep.subr.mxu0 0.0
        %1052 = vmatpush1.xpose.msra.mxu0 %v691
        %1053 = vmatprep.subr.mxu0 0.0
        %1054 = vmatpush1.xpose.msra.mxu0 %v694
        %1055 = vmatprep.subr.mxu0 0.0
        %1056 = vmatpush1.xpose.msra.mxu0 %v697
        %1057 = vmatprep.subr.mxu0 0.0
        %1058 = vmatpush1.xpose.msra.mxu0 %v700
        %1059 = vmatprep.subr.mxu0 0.0
        %1060 = vmatpush1.xpose.msra.mxu0 %v703
        %1061 = vmatprep.subr.mxu0 0.0
        %1062 = vmatpush1.xpose.msra.mxu0 %v706
        %1063 = vmatprep.subr.mxu0 0.0
        %1064 = vmatpush1.xpose.msra.mxu0 %v709
        %1065 = vmatprep.subr.mxu0 0.0
        %1066 = vmatpush1.xpose.msra.mxu0 %v712
        %1067 = vmatprep.subr.mxu0 0.0
        %1068 = vmatpush1.xpose.msra.mxu0 %v715
        %1069 = vmatprep.subr.mxu0 0.0
        %1070 = vmatpush1.xpose.msra.mxu0 %v718
        %1071 = vmatprep.subr.mxu0 0.0
        %1072 = vmatpush1.xpose.msra.mxu0 %v721
        %1073 = vmatprep.subr.mxu0 0.0
        %1074 = vmatpush1.xpose.msra.mxu0 %v724
        %1075 = vmatprep.subr.mxu0 0.0
        %1076 = vmatpush1.xpose.msra.mxu0 %v727
        %1077 = vmatprep.subr.mxu0 0.0
        %1078 = vmatpush1.xpose.msra.mxu0 %v730
        %1079 = vmatprep.subr.mxu0 0.0
        %1080 = vmatpush1.xpose.msra.mxu0 %v733
        %1081 = vmatprep.subr.mxu0 0.0
        %1082 = vmatpush1.xpose.msra.mxu0 %v736
        %1083 = vmatprep.subr.mxu0 0.0
        %1084 = vmatpush1.xpose.msra.mxu0 %v739
        %1085 = vmatprep.subr.mxu0 0.0
        %1086 = vmatpush1.xpose.msra.mxu0 %v742
        %1087 = vmatprep.subr.mxu0 0.0
        %1088 = vmatpush1.xpose.msra.mxu0 %v745
        %1089 = vmatprep.subr.mxu0 0.0
        %1090 = vmatpush1.xpose.msra.mxu0 %v748
        %1091 = vmatprep.subr.mxu0 0.0
        %1092 = vmatpush1.xpose.msra.mxu0 %v751
        %1093 = vmatprep.subr.mxu0 0.0
        %1094 = vmatpush1.xpose.msra.mxu0 %v754
        %1095 = vmatprep.subr.mxu0 0.0
        %1096 = vmatpush1.xpose.msra.mxu0 %v757
        %1097 = vmatprep.mubr.f32.mxu0 0.0
        %1098 = vmatmul.mubr.f32.gmra.mrb[0].mxu0 %v460
        %v1099 = vpop.f32.mrb[0].mxu0
        %v1100 = vadd.f32 %v441, %v1099
        %v1101 = vpop.f32.mrb[0].mxu0
        %v1102 = vadd.f32 %v441, %v1101
        %1103 = vmatprep.mubr.f32.mxu0 0.0
        %1104 = vmatmul.mubr.f32.gmra.mrb[0].mxu0 %v463
        %v1105 = vpop.f32.mrb[0].mxu0
        %v1106 = vadd.f32 %v446, %v1105
        %v1107 = vpop.f32.mrb[0].mxu0
        %v1108 = vadd.f32 %v446, %v1107
        %1109 = vmatprep.mubr.f32.mxu0 0.0
        %1110 = vmatmul.mubr.f32.gmra.mrb[0].mxu0 %v466
        %v1111 = vpop.f32.mrb[0].mxu0
        %v1112 = vadd.f32 %v451, %v1111
        %v1113 = vpop.f32.mrb[0].mxu0
        %v1114 = vadd.f32 %v451, %v1113
        %1115 = vmatprep.mubr.f32.mxu0 0.0
        %1116 = vmatmul.mubr.f32.gmra.mrb[0].mxu0 %v469
        %v1117 = vpop.f32.mrb[0].mxu0
        %v1118 = vadd.f32 %v456, %v1117
        %v1119 = vpop.f32.mrb[0].mxu0
        %v1120 = vadd.f32 %v456, %v1119
        %1121 = vdwg.mxu0
        %1122 = vmatprep.subr.mxu0 0.0
        %1123 = vmatpush1.xpose.msra.mxu0 %v760
        %1124 = vmatprep.subr.mxu0 0.0
        %1125 = vmatpush1.xpose.msra.mxu0 %v763
        %1126 = vmatprep.subr.mxu0 0.0
        %1127 = vmatpush1.xpose.msra.mxu0 %v766
        %1128 = vmatprep.subr.mxu0 0.0
        %1129 = vmatpush1.xpose.msra.mxu0 %v769
        %1130 = vmatprep.subr.mxu0 0.0
        %1131 = vmatpush1.xpose.msra.mxu0 %v772
        %1132 = vmatprep.subr.mxu0 0.0
        %1133 = vmatpush1.xpose.msra.mxu0 %v775
        %1134 = vmatprep.subr.mxu0 0.0
        %1135 = vmatpush1.xpose.msra.mxu0 %v778
        %1136 = vmatprep.subr.mxu0 0.0
        %1137 = vmatpush1.xpose.msra.mxu0 %v781
        %1138 = vmatprep.subr.mxu0 0.0
        %1139 = vmatpush1.xpose.msra.mxu0 %v784
        %1140 = vmatprep.subr.mxu0 0.0
        %1141 = vmatpush1.xpose.msra.mxu0 %v787
        %1142 = vmatprep.subr.mxu0 0.0
        %1143 = vmatpush1.xpose.msra.mxu0 %v790
        %1144 = vmatprep.subr.mxu0 0.0
        %1145 = vmatpush1.xpose.msra.mxu0 %v793
        %1146 = vmatprep.subr.mxu0 0.0
        %1147 = vmatpush1.xpose.msra.mxu0 %v796
        %1148 = vmatprep.subr.mxu0 0.0
        %1149 = vmatpush1.xpose.msra.mxu0 %v799
        %1150 = vmatprep.subr.mxu0 0.0
        %1151 = vmatpush1.xpose.msra.mxu0 %v802
        %1152 = vmatprep.subr.mxu0 0.0
        %1153 = vmatpush1.xpose.msra.mxu0 %v805
        %1154 = vmatprep.subr.mxu0 0.0
        %1155 = vmatpush1.xpose.msra.mxu0 %v808
        %1156 = vmatprep.subr.mxu0 0.0
        %1157 = vmatpush1.xpose.msra.mxu0 %v811
        %1158 = vmatprep.subr.mxu0 0.0
        %1159 = vmatpush1.xpose.msra.mxu0 %v814
        %1160 = vmatprep.subr.mxu0 0.0
        %1161 = vmatpush1.xpose.msra.mxu0 %v817
        %1162 = vmatprep.subr.mxu0 0.0
        %1163 = vmatpush1.xpose.msra.mxu0 %v820
        %1164 = vmatprep.subr.mxu0 0.0
        %1165 = vmatpush1.xpose.msra.mxu0 %v823
        %1166 = vmatprep.subr.mxu0 0.0
        %1167 = vmatpush1.xpose.msra.mxu0 %v826
        %1168 = vmatprep.subr.mxu0 0.0
        %1169 = vmatpush1.xpose.msra.mxu0 %v829
        %1170 = vmatprep.subr.mxu0 0.0
        %1171 = vmatpush1.xpose.msra.mxu0 %v832
        %1172 = vmatprep.subr.mxu0 0.0
        %1173 = vmatpush1.xpose.msra.mxu0 %v835
        %1174 = vmatprep.subr.mxu0 0.0
        %1175 = vmatpush1.xpose.msra.mxu0 %v838
        %1176 = vmatprep.subr.mxu0 0.0
        %1177 = vmatpush1.xpose.msra.mxu0 %v841
        %1178 = vmatprep.subr.mxu0 0.0
        %1179 = vmatpush1.xpose.msra.mxu0 %v844
        %1180 = vmatprep.subr.mxu0 0.0
        %1181 = vmatpush1.xpose.msra.mxu0 %v847
        %1182 = vmatprep.subr.mxu0 0.0
        %1183 = vmatpush1.xpose.msra.mxu0 %v850
        %1184 = vmatprep.subr.mxu0 0.0
        %1185 = vmatpush1.xpose.msra.mxu0 %v853
        %1186 = vmatprep.mubr.f32.mxu0 0.0
        %1187 = vmatmul.mubr.f32.gmra.mrb[0].mxu0 %v460
        %v1188 = vpop.f32.mrb[0].mxu0
        %v1189 = vadd.f32 %v441, %v1188
        %v1190 = vpop.f32.mrb[0].mxu0
        %v1191 = vadd.f32 %v441, %v1190
        %1192 = vmatprep.mubr.f32.mxu0 0.0
        %1193 = vmatmul.mubr.f32.gmra.mrb[0].mxu0 %v463
        %v1194 = vpop.f32.mrb[0].mxu0
        %v1195 = vadd.f32 %v446, %v1194
        %v1196 = vpop.f32.mrb[0].mxu0
        %v1197 = vadd.f32 %v446, %v1196
        %1198 = vmatprep.mubr.f32.mxu0 0.0
        %1199 = vmatmul.mubr.f32.gmra.mrb[0].mxu0 %v466
        %v1200 = vpop.f32.mrb[0].mxu0
        %v1201 = vadd.f32 %v451, %v1200
        %v1202 = vpop.f32.mrb[0].mxu0
        %v1203 = vadd.f32 %v451, %v1202
        %1204 = vmatprep.mubr.f32.mxu0 0.0
        %1205 = vmatmul.mubr.f32.gmra.mrb[0].mxu0 %v469
        %v1206 = vpop.f32.mrb[0].mxu0
        %v1207 = vadd.f32 %v456, %v1206
        %v1208 = vpop.f32.mrb[0].mxu0
        %v1209 = vadd.f32 %v456, %v1208
        %1210 = vdwg.mxu0
        %v1211 = vmax.f32 %v922, 0.0
        %v1212 = vmax.f32 %v924, 0.0
        %v1213 = vmax.f32 %v1011, 0.0
        %v1214 = vmax.f32 %v1013, 0.0
        %v1215 = vmax.f32 %v1100, 0.0
        %v1216 = vmax.f32 %v1102, 0.0
        %v1217 = vmax.f32 %v1189, 0.0
        %v1218 = vmax.f32 %v1191, 0.0
        %v1219 = vmax.f32 %v928, 0.0
        %v1220 = vmax.f32 %v930, 0.0
        %v1221 = vmax.f32 %v1017, 0.0
        %v1222 = vmax.f32 %v1019, 0.0
        %v1223 = vmax.f32 %v1106, 0.0
        %v1224 = vmax.f32 %v1108, 0.0
        %v1225 = vmax.f32 %v1195, 0.0
        %v1226 = vmax.f32 %v1197, 0.0
        %v1227 = vmax.f32 %v934, 0.0
        %v1228 = vmax.f32 %v936, 0.0
        %v1229 = vmax.f32 %v1023, 0.0
        %v1230 = vmax.f32 %v1025, 0.0
        %v1231 = vmax.f32 %v1112, 0.0
        %v1232 = vmax.f32 %v1114, 0.0
        %v1233 = vmax.f32 %v1201, 0.0
        %v1234 = vmax.f32 %v1203, 0.0
        %v1235 = vmax.f32 %v940, 0.0
        %v1236 = vmax.f32 %v942, 0.0
        %v1237 = vmax.f32 %v1029, 0.0
        %v1238 = vmax.f32 %v1031, 0.0
        %v1239 = vmax.f32 %v1118, 0.0
        %v1240 = vmax.f32 %v1120, 0.0
        %v1241 = vmax.f32 %v1207, 0.0
        %v1242 = vmax.f32 %v1209, 0.0
        %v1243 = vld [vmem:[%s3] sm:$0xff]
        %v1244 = vld [vmem:[%s3 + $0x8] sm:$0xff]
        %v1245 = vld [vmem:[%s3 + $0x10] sm:$0xff]
        %v1246 = vld [vmem:[%s3 + $0x18] sm:$0xff]
        %v1247 = vld [vmem:[%s4] sm:$0xff]
        %v1248 = vld [vmem:[%s4 + $0x8] sm:$0xff]
        %v1249 = vld [vmem:[%s4 + $0x10] sm:$0xff]
        %v1250 = vld [vmem:[%s4 + $0x18] sm:$0xff]
        %1252 = vset.pattern.permute.xlu0 0
        %1253 = vperm.xlu0 %1252, %v1247
        %v1254 = vpop.permute.xlu0 %1253
        %1257 = vset.pattern.permute.xlu0 0
        %1258 = vperm.xlu0 %1257, %v1248
        %v1259 = vpop.permute.xlu0 %1258
        %1262 = vset.pattern.permute.xlu0 0
        %1263 = vperm.xlu0 %1262, %v1249
        %v1264 = vpop.permute.xlu0 %1263
        %1267 = vset.pattern.permute.xlu0 0
        %1268 = vperm.xlu0 %1267, %v1250
        %v1269 = vpop.permute.xlu0 %1268
        %vm1271 = vcmask 261120
        %v1273 = vsel %vm1271, %v1243, 0
        %v1276 = vsel %vm1271, %v1244, 0
        %v1279 = vsel %vm1271, %v1245, 0
        %v1282 = vsel %vm1271, %v1246, 0
        %1284 = vmatprep.subr.mxu0 %v1212
        %1285 = vmatpush1.msra.mxu0 %v1211
        %1286 = vmatprep.subr.mxu0 %v1220
        %1287 = vmatpush1.msra.mxu0 %v1219
        %1288 = vmatprep.subr.mxu0 %v1228
        %1289 = vmatpush1.msra.mxu0 %v1227
        %1290 = vmatprep.subr.mxu0 %v1236
        %1291 = vmatpush1.msra.mxu0 %v1235
        %1292 = vmatprep.subr.mxu0 0.0
        %1293 = vmatpush1.msra.mxu0 0.0
        %1294 = vmatprep.subr.mxu0 0.0
        %1295 = vmatpush1.msra.mxu0 0.0
        %1296 = vmatprep.subr.mxu0 0.0
        %1297 = vmatpush1.msra.mxu0 0.0
        %1298 = vmatprep.subr.mxu0 0.0
        %1299 = vmatpush1.msra.mxu0 0.0
        %1300 = vmatprep.subr.mxu0 0.0
        %1301 = vmatpush1.msra.mxu0 0.0
        %1302 = vmatprep.subr.mxu0 0.0
        %1303 = vmatpush1.msra.mxu0 0.0
        %1304 = vmatprep.subr.mxu0 0.0
        %1305 = vmatpush1.msra.mxu0 0.0
        %1306 = vmatprep.subr.mxu0 0.0
        %1307 = vmatpush1.msra.mxu0 0.0
        %1308 = vmatprep.subr.mxu0 0.0
        %1309 = vmatpush1.msra.mxu0 0.0
        %1310 = vmatprep.subr.mxu0 0.0
        %1311 = vmatpush1.msra.mxu0 0.0
        %1312 = vmatprep.subr.mxu0 0.0
        %1313 = vmatpush1.msra.mxu0 0.0
        %1314 = vmatprep.subr.mxu0 0.0
        %1315 = vmatpush1.msra.mxu0 0.0
        %1316 = vmatprep.subr.mxu0 0.0
        %1317 = vmatpush1.msra.mxu0 0.0
        %1318 = vmatprep.subr.mxu0 0.0
        %1319 = vmatpush1.msra.mxu0 0.0
        %1320 = vmatprep.subr.mxu0 0.0
        %1321 = vmatpush1.msra.mxu0 0.0
        %1322 = vmatprep.subr.mxu0 0.0
        %1323 = vmatpush1.msra.mxu0 0.0
        %1324 = vmatprep.subr.mxu0 0.0
        %1325 = vmatpush1.msra.mxu0 0.0
        %1326 = vmatprep.subr.mxu0 0.0
        %1327 = vmatpush1.msra.mxu0 0.0
        %1328 = vmatprep.subr.mxu0 0.0
        %1329 = vmatpush1.msra.mxu0 0.0
        %1330 = vmatprep.subr.mxu0 0.0
        %1331 = vmatpush1.msra.mxu0 0.0
        %1332 = vmatprep.subr.mxu0 0.0
        %1333 = vmatpush1.msra.mxu0 0.0
        %1334 = vmatprep.subr.mxu0 0.0
        %1335 = vmatpush1.msra.mxu0 0.0
        %1336 = vmatprep.subr.mxu0 0.0
        %1337 = vmatpush1.msra.mxu0 0.0
        %1338 = vmatprep.subr.mxu0 0.0
        %1339 = vmatpush1.msra.mxu0 0.0
        %1340 = vmatprep.subr.mxu0 0.0
        %1341 = vmatpush1.msra.mxu0 0.0
        %1342 = vmatprep.subr.mxu0 0.0
        %1343 = vmatpush1.msra.mxu0 0.0
        %1344 = vmatprep.subr.mxu0 0.0
        %1345 = vmatpush1.msra.mxu0 0.0
        %1346 = vmatprep.subr.mxu0 0.0
        %1347 = vmatpush1.msra.mxu0 0.0
        %1348 = vmatprep.mubr.f32.mxu0 0.0
        %1349 = vmatmul.mubr.f32.gmra.mrb[0].mxu0 %v1273
        %v1350 = vpop.f32.mrb[0].mxu0
        %v1351 = vadd.f32 %v1254, %v1350
        %v1352 = vpop.f32.mrb[0].mxu0
        %v1353 = vadd.f32 %v1254, %v1352
        %1354 = vmatprep.mubr.f32.mxu0 0.0
        %1355 = vmatmul.mubr.f32.gmra.mrb[0].mxu0 %v1276
        %v1356 = vpop.f32.mrb[0].mxu0
        %v1357 = vadd.f32 %v1259, %v1356
        %v1358 = vpop.f32.mrb[0].mxu0
        %v1359 = vadd.f32 %v1259, %v1358
        %1360 = vmatprep.mubr.f32.mxu0 0.0
        %1361 = vmatmul.mubr.f32.gmra.mrb[0].mxu0 %v1279
        %v1362 = vpop.f32.mrb[0].mxu0
        %v1363 = vadd.f32 %v1264, %v1362
        %v1364 = vpop.f32.mrb[0].mxu0
        %v1365 = vadd.f32 %v1264, %v1364
        %1366 = vmatprep.mubr.f32.mxu0 0.0
        %1367 = vmatmul.mubr.f32.gmra.mrb[0].mxu0 %v1282
        %v1368 = vpop.f32.mrb[0].mxu0
        %v1369 = vadd.f32 %v1269, %v1368
        %v1370 = vpop.f32.mrb[0].mxu0
        %v1371 = vadd.f32 %v1269, %v1370
        %1372 = vdwg.mxu0
        %1373 = vmatprep.subr.mxu0 %v1214
        %1374 = vmatpush1.msra.mxu0 %v1213
        %1375 = vmatprep.subr.mxu0 %v1222
        %1376 = vmatpush1.msra.mxu0 %v1221
        %1377 = vmatprep.subr.mxu0 %v1230
        %1378 = vmatpush1.msra.mxu0 %v1229
        %1379 = vmatprep.subr.mxu0 %v1238
        %1380 = vmatpush1.msra.mxu0 %v1237
        %1381 = vmatprep.subr.mxu0 0.0
        %1382 = vmatpush1.msra.mxu0 0.0
        %1383 = vmatprep.subr.mxu0 0.0
        %1384 = vmatpush1.msra.mxu0 0.0
        %1385 = vmatprep.subr.mxu0 0.0
        %1386 = vmatpush1.msra.mxu0 0.0
        %1387 = vmatprep.subr.mxu0 0.0
        %1388 = vmatpush1.msra.mxu0 0.0
        %1389 = vmatprep.subr.mxu0 0.0
        %1390 = vmatpush1.msra.mxu0 0.0
        %1391 = vmatprep.subr.mxu0 0.0
        %1392 = vmatpush1.msra.mxu0 0.0
        %1393 = vmatprep.subr.mxu0 0.0
        %1394 = vmatpush1.msra.mxu0 0.0
        %1395 = vmatprep.subr.mxu0 0.0
        %1396 = vmatpush1.msra.mxu0 0.0
        %1397 = vmatprep.subr.mxu0 0.0
        %1398 = vmatpush1.msra.mxu0 0.0
        %1399 = vmatprep.subr.mxu0 0.0
        %1400 = vmatpush1.msra.mxu0 0.0
        %1401 = vmatprep.subr.mxu0 0.0
        %1402 = vmatpush1.msra.mxu0 0.0
        %1403 = vmatprep.subr.mxu0 0.0
        %1404 = vmatpush1.msra.mxu0 0.0
        %1405 = vmatprep.subr.mxu0 0.0
        %1406 = vmatpush1.msra.mxu0 0.0
        %1407 = vmatprep.subr.mxu0 0.0
        %1408 = vmatpush1.msra.mxu0 0.0
        %1409 = vmatprep.subr.mxu0 0.0
        %1410 = vmatpush1.msra.mxu0 0.0
        %1411 = vmatprep.subr.mxu0 0.0
        %1412 = vmatpush1.msra.mxu0 0.0
        %1413 = vmatprep.subr.mxu0 0.0
        %1414 = vmatpush1.msra.mxu0 0.0
        %1415 = vmatprep.subr.mxu0 0.0
        %1416 = vmatpush1.msra.mxu0 0.0
        %1417 = vmatprep.subr.mxu0 0.0
        %1418 = vmatpush1.msra.mxu0 0.0
        %1419 = vmatprep.subr.mxu0 0.0
        %1420 = vmatpush1.msra.mxu0 0.0
        %1421 = vmatprep.subr.mxu0 0.0
        %1422 = vmatpush1.msra.mxu0 0.0
        %1423 = vmatprep.subr.mxu0 0.0
        %1424 = vmatpush1.msra.mxu0 0.0
        %1425 = vmatprep.subr.mxu0 0.0
        %1426 = vmatpush1.msra.mxu0 0.0
        %1427 = vmatprep.subr.mxu0 0.0
        %1428 = vmatpush1.msra.mxu0 0.0
        %1429 = vmatprep.subr.mxu0 0.0
        %1430 = vmatpush1.msra.mxu0 0.0
        %1431 = vmatprep.subr.mxu0 0.0
        %1432 = vmatpush1.msra.mxu0 0.0
        %1433 = vmatprep.subr.mxu0 0.0
        %1434 = vmatpush1.msra.mxu0 0.0
        %1435 = vmatprep.subr.mxu0 0.0
        %1436 = vmatpush1.msra.mxu0 0.0
        %1437 = vmatprep.mubr.f32.mxu0 0.0
        %1438 = vmatmul.mubr.f32.gmra.mrb[0].mxu0 %v1273
        %v1439 = vpop.f32.mrb[0].mxu0
        %v1440 = vadd.f32 %v1254, %v1439
        %v1441 = vpop.f32.mrb[0].mxu0
        %v1442 = vadd.f32 %v1254, %v1441
        %1443 = vmatprep.mubr.f32.mxu0 0.0
        %1444 = vmatmul.mubr.f32.gmra.mrb[0].mxu0 %v1276
        %v1445 = vpop.f32.mrb[0].mxu0
        %v1446 = vadd.f32 %v1259, %v1445
        %v1447 = vpop.f32.mrb[0].mxu0
        %v1448 = vadd.f32 %v1259, %v1447
        %1449 = vmatprep.mubr.f32.mxu0 0.0
        %1450 = vmatmul.mubr.f32.gmra.mrb[0].mxu0 %v1279
        %v1451 = vpop.f32.mrb[0].mxu0
        %v1452 = vadd.f32 %v1264, %v1451
        %v1453 = vpop.f32.mrb[0].mxu0
        %v1454 = vadd.f32 %v1264, %v1453
        %1455 = vmatprep.mubr.f32.mxu0 0.0
        %1456 = vmatmul.mubr.f32.gmra.mrb[0].mxu0 %v1282
        %v1457 = vpop.f32.mrb[0].mxu0
        %v1458 = vadd.f32 %v1269, %v1457
        %v1459 = vpop.f32.mrb[0].mxu0
        %v1460 = vadd.f32 %v1269, %v1459
        %1461 = vdwg.mxu0
        %1462 = vmatprep.subr.mxu0 %v1216
        %1463 = vmatpush1.msra.mxu0 %v1215
        %1464 = vmatprep.subr.mxu0 %v1224
        %1465 = vmatpush1.msra.mxu0 %v1223
        %1466 = vmatprep.subr.mxu0 %v1232
        %1467 = vmatpush1.msra.mxu0 %v1231
        %1468 = vmatprep.subr.mxu0 %v1240
        %1469 = vmatpush1.msra.mxu0 %v1239
        %1470 = vmatprep.subr.mxu0 0.0
        %1471 = vmatpush1.msra.mxu0 0.0
        %1472 = vmatprep.subr.mxu0 0.0
        %1473 = vmatpush1.msra.mxu0 0.0
        %1474 = vmatprep.subr.mxu0 0.0
        %1475 = vmatpush1.msra.mxu0 0.0
        %1476 = vmatprep.subr.mxu0 0.0
        %1477 = vmatpush1.msra.mxu0 0.0
        %1478 = vmatprep.subr.mxu0 0.0
        %1479 = vmatpush1.msra.mxu0 0.0
        %1480 = vmatprep.subr.mxu0 0.0
        %1481 = vmatpush1.msra.mxu0 0.0
        %1482 = vmatprep.subr.mxu0 0.0
        %1483 = vmatpush1.msra.mxu0 0.0
        %1484 = vmatprep.subr.mxu0 0.0
        %1485 = vmatpush1.msra.mxu0 0.0
        %1486 = vmatprep.subr.mxu0 0.0
        %1487 = vmatpush1.msra.mxu0 0.0
        %1488 = vmatprep.subr.mxu0 0.0
        %1489 = vmatpush1.msra.mxu0 0.0
        %1490 = vmatprep.subr.mxu0 0.0
        %1491 = vmatpush1.msra.mxu0 0.0
        %1492 = vmatprep.subr.mxu0 0.0
        %1493 = vmatpush1.msra.mxu0 0.0
        %1494 = vmatprep.subr.mxu0 0.0
        %1495 = vmatpush1.msra.mxu0 0.0
        %1496 = vmatprep.subr.mxu0 0.0
        %1497 = vmatpush1.msra.mxu0 0.0
        %1498 = vmatprep.subr.mxu0 0.0
        %1499 = vmatpush1.msra.mxu0 0.0
        %1500 = vmatprep.subr.mxu0 0.0
        %1501 = vmatpush1.msra.mxu0 0.0
        %1502 = vmatprep.subr.mxu0 0.0
        %1503 = vmatpush1.msra.mxu0 0.0
        %1504 = vmatprep.subr.mxu0 0.0
        %1505 = vmatpush1.msra.mxu0 0.0
        %1506 = vmatprep.subr.mxu0 0.0
        %1507 = vmatpush1.msra.mxu0 0.0
        %1508 = vmatprep.subr.mxu0 0.0
        %1509 = vmatpush1.msra.mxu0 0.0
        %1510 = vmatprep.subr.mxu0 0.0
        %1511 = vmatpush1.msra.mxu0 0.0
        %1512 = vmatprep.subr.mxu0 0.0
        %1513 = vmatpush1.msra.mxu0 0.0
        %1514 = vmatprep.subr.mxu0 0.0
        %1515 = vmatpush1.msra.mxu0 0.0
        %1516 = vmatprep.subr.mxu0 0.0
        %1517 = vmatpush1.msra.mxu0 0.0
        %1518 = vmatprep.subr.mxu0 0.0
        %1519 = vmatpush1.msra.mxu0 0.0
        %1520 = vmatprep.subr.mxu0 0.0
        %1521 = vmatpush1.msra.mxu0 0.0
        %1522 = vmatprep.subr.mxu0 0.0
        %1523 = vmatpush1.msra.mxu0 0.0
        %1524 = vmatprep.subr.mxu0 0.0
        %1525 = vmatpush1.msra.mxu0 0.0
        %1526 = vmatprep.mubr.f32.mxu0 0.0
        %1527 = vmatmul.mubr.f32.gmra.mrb[0].mxu0 %v1273
        %v1528 = vpop.f32.mrb[0].mxu0
        %v1529 = vadd.f32 %v1254, %v1528
        %v1530 = vpop.f32.mrb[0].mxu0
        %v1531 = vadd.f32 %v1254, %v1530
        %1532 = vmatprep.mubr.f32.mxu0 0.0
        %1533 = vmatmul.mubr.f32.gmra.mrb[0].mxu0 %v1276
        %v1534 = vpop.f32.mrb[0].mxu0
        %v1535 = vadd.f32 %v1259, %v1534
        %v1536 = vpop.f32.mrb[0].mxu0
        %v1537 = vadd.f32 %v1259, %v1536
        %1538 = vmatprep.mubr.f32.mxu0 0.0
        %1539 = vmatmul.mubr.f32.gmra.mrb[0].mxu0 %v1279
        %v1540 = vpop.f32.mrb[0].mxu0
        %v1541 = vadd.f32 %v1264, %v1540
        %v1542 = vpop.f32.mrb[0].mxu0
        %v1543 = vadd.f32 %v1264, %v1542
        %1544 = vmatprep.mubr.f32.mxu0 0.0
        %1545 = vmatmul.mubr.f32.gmra.mrb[0].mxu0 %v1282
        %v1546 = vpop.f32.mrb[0].mxu0
        %v1547 = vadd.f32 %v1269, %v1546
        %v1548 = vpop.f32.mrb[0].mxu0
        %v1549 = vadd.f32 %v1269, %v1548
        %1550 = vdwg.mxu0
        %1551 = vmatprep.subr.mxu0 %v1218
        %1552 = vmatpush1.msra.mxu0 %v1217
        %1553 = vmatprep.subr.mxu0 %v1226
        %1554 = vmatpush1.msra.mxu0 %v1225
        %1555 = vmatprep.subr.mxu0 %v1234
        %1556 = vmatpush1.msra.mxu0 %v1233
        %1557 = vmatprep.subr.mxu0 %v1242
        %1558 = vmatpush1.msra.mxu0 %v1241
        %1559 = vmatprep.subr.mxu0 0.0
        %1560 = vmatpush1.msra.mxu0 0.0
        %1561 = vmatprep.subr.mxu0 0.0
        %1562 = vmatpush1.msra.mxu0 0.0
        %1563 = vmatprep.subr.mxu0 0.0
        %1564 = vmatpush1.msra.mxu0 0.0
        %1565 = vmatprep.subr.mxu0 0.0
        %1566 = vmatpush1.msra.mxu0 0.0
        %1567 = vmatprep.subr.mxu0 0.0
        %1568 = vmatpush1.msra.mxu0 0.0
        %1569 = vmatprep.subr.mxu0 0.0
        %1570 = vmatpush1.msra.mxu0 0.0
        %1571 = vmatprep.subr.mxu0 0.0
        %1572 = vmatpush1.msra.mxu0 0.0
        %1573 = vmatprep.subr.mxu0 0.0
        %1574 = vmatpush1.msra.mxu0 0.0
        %1575 = vmatprep.subr.mxu0 0.0
        %1576 = vmatpush1.msra.mxu0 0.0
        %1577 = vmatprep.subr.mxu0 0.0
        %1578 = vmatpush1.msra.mxu0 0.0
        %1579 = vmatprep.subr.mxu0 0.0
        %1580 = vmatpush1.msra.mxu0 0.0
        %1581 = vmatprep.subr.mxu0 0.0
        %1582 = vmatpush1.msra.mxu0 0.0
        %1583 = vmatprep.subr.mxu0 0.0
        %1584 = vmatpush1.msra.mxu0 0.0
        %1585 = vmatprep.subr.mxu0 0.0
        %1586 = vmatpush1.msra.mxu0 0.0
        %1587 = vmatprep.subr.mxu0 0.0
        %1588 = vmatpush1.msra.mxu0 0.0
        %1589 = vmatprep.subr.mxu0 0.0
        %1590 = vmatpush1.msra.mxu0 0.0
        %1591 = vmatprep.subr.mxu0 0.0
        %1592 = vmatpush1.msra.mxu0 0.0
        %1593 = vmatprep.subr.mxu0 0.0
        %1594 = vmatpush1.msra.mxu0 0.0
        %1595 = vmatprep.subr.mxu0 0.0
        %1596 = vmatpush1.msra.mxu0 0.0
        %1597 = vmatprep.subr.mxu0 0.0
        %1598 = vmatpush1.msra.mxu0 0.0
        %1599 = vmatprep.subr.mxu0 0.0
        %1600 = vmatpush1.msra.mxu0 0.0
        %1601 = vmatprep.subr.mxu0 0.0
        %1602 = vmatpush1.msra.mxu0 0.0
        %1603 = vmatprep.subr.mxu0 0.0
        %1604 = vmatpush1.msra.mxu0 0.0
        %1605 = vmatprep.subr.mxu0 0.0
        %1606 = vmatpush1.msra.mxu0 0.0
        %1607 = vmatprep.subr.mxu0 0.0
        %1608 = vmatpush1.msra.mxu0 0.0
        %1609 = vmatprep.subr.mxu0 0.0
        %1610 = vmatpush1.msra.mxu0 0.0
        %1611 = vmatprep.subr.mxu0 0.0
        %1612 = vmatpush1.msra.mxu0 0.0
        %1613 = vmatprep.subr.mxu0 0.0
        %1614 = vmatpush1.msra.mxu0 0.0
        %1615 = vmatprep.mubr.f32.mxu0 0.0
        %1616 = vmatmul.mubr.f32.gmra.mrb[0].mxu0 %v1273
        %v1617 = vpop.f32.mrb[0].mxu0
        %v1618 = vadd.f32 %v1254, %v1617
        %v1619 = vpop.f32.mrb[0].mxu0
        %v1620 = vadd.f32 %v1254, %v1619
        %1621 = vmatprep.mubr.f32.mxu0 0.0
        %1622 = vmatmul.mubr.f32.gmra.mrb[0].mxu0 %v1276
        %v1623 = vpop.f32.mrb[0].mxu0
        %v1624 = vadd.f32 %v1259, %v1623
        %v1625 = vpop.f32.mrb[0].mxu0
        %v1626 = vadd.f32 %v1259, %v1625
        %1627 = vmatprep.mubr.f32.mxu0 0.0
        %1628 = vmatmul.mubr.f32.gmra.mrb[0].mxu0 %v1279
        %v1629 = vpop.f32.mrb[0].mxu0
        %v1630 = vadd.f32 %v1264, %v1629
        %v1631 = vpop.f32.mrb[0].mxu0
        %v1632 = vadd.f32 %v1264, %v1631
        %1633 = vmatprep.mubr.f32.mxu0 0.0
        %1634 = vmatmul.mubr.f32.gmra.mrb[0].mxu0 %v1282
        %v1635 = vpop.f32.mrb[0].mxu0
        %v1636 = vadd.f32 %v1269, %v1635
        %v1637 = vpop.f32.mrb[0].mxu0
        %v1638 = vadd.f32 %v1269, %v1637
        %1639 = vdwg.mxu0
        %v1640 = vmax.f32 %v1351, 0.0
        %v1641 = vmax.f32 %v1353, 0.0
        %v1642 = vmax.f32 %v1440, 0.0
        %v1643 = vmax.f32 %v1442, 0.0
        %v1644 = vmax.f32 %v1529, 0.0
        %v1645 = vmax.f32 %v1531, 0.0
        %v1646 = vmax.f32 %v1618, 0.0
        %v1647 = vmax.f32 %v1620, 0.0
        %v1648 = vmax.f32 %v1357, 0.0
        %v1649 = vmax.f32 %v1359, 0.0
        %v1650 = vmax.f32 %v1446, 0.0
        %v1651 = vmax.f32 %v1448, 0.0
        %v1652 = vmax.f32 %v1535, 0.0
        %v1653 = vmax.f32 %v1537, 0.0
        %v1654 = vmax.f32 %v1624, 0.0
        %v1655 = vmax.f32 %v1626, 0.0
        %v1656 = vmax.f32 %v1363, 0.0
        %v1657 = vmax.f32 %v1365, 0.0
        %v1658 = vmax.f32 %v1452, 0.0
        %v1659 = vmax.f32 %v1454, 0.0
        %v1660 = vmax.f32 %v1541, 0.0
        %v1661 = vmax.f32 %v1543, 0.0
        %v1662 = vmax.f32 %v1630, 0.0
        %v1663 = vmax.f32 %v1632, 0.0
        %v1664 = vmax.f32 %v1369, 0.0
        %v1665 = vmax.f32 %v1371, 0.0
        %v1666 = vmax.f32 %v1458, 0.0
        %v1667 = vmax.f32 %v1460, 0.0
        %v1668 = vmax.f32 %v1547, 0.0
        %v1669 = vmax.f32 %v1549, 0.0
        %v1670 = vmax.f32 %v1636, 0.0
        %v1671 = vmax.f32 %v1638, 0.0
        %v1672 = vld [vmem:[%s5] sm:$0x1]
        %v1673 = vld [vmem:[#allocation2] sm:$0x1]
        %1675 = vset.pattern.permute.xlu0 0
        %1676 = vperm.xlu0 %1675, %v1673
        %v1677 = vpop.permute.xlu0 %1676
        %v1679 = vlaneseq
        %v1680 = vshrl.u32 %v1679, 7
        %v1681 = vsub.s32 0, %v1680
        %v1682 = vrot.slane %v1677, %v1681
        %v1684 = vsel %vm1271, %v1672, 0
        %1686 = vmatprep.subr.mxu0 %v1641
        %1687 = vmatpush1.msra.mxu0 %v1640
        %1688 = vmatprep.subr.mxu0 %v1649
        %1689 = vmatpush1.msra.mxu0 %v1648
        %1690 = vmatprep.subr.mxu0 %v1657
        %1691 = vmatpush1.msra.mxu0 %v1656
        %1692 = vmatprep.subr.mxu0 %v1665
        %1693 = vmatpush1.msra.mxu0 %v1664
        %1694 = vmatprep.subr.mxu0 0.0
        %1695 = vmatpush1.msra.mxu0 0.0
        %1696 = vmatprep.subr.mxu0 0.0
        %1697 = vmatpush1.msra.mxu0 0.0
        %1698 = vmatprep.subr.mxu0 0.0
        %1699 = vmatpush1.msra.mxu0 0.0
        %1700 = vmatprep.subr.mxu0 0.0
        %1701 = vmatpush1.msra.mxu0 0.0
        %1702 = vmatprep.subr.mxu0 0.0
        %1703 = vmatpush1.msra.mxu0 0.0
        %1704 = vmatprep.subr.mxu0 0.0
        %1705 = vmatpush1.msra.mxu0 0.0
        %1706 = vmatprep.subr.mxu0 0.0
        %1707 = vmatpush1.msra.mxu0 0.0
        %1708 = vmatprep.subr.mxu0 0.0
        %1709 = vmatpush1.msra.mxu0 0.0
        %1710 = vmatprep.subr.mxu0 0.0
        %1711 = vmatpush1.msra.mxu0 0.0
        %1712 = vmatprep.subr.mxu0 0.0
        %1713 = vmatpush1.msra.mxu0 0.0
        %1714 = vmatprep.subr.mxu0 0.0
        %1715 = vmatpush1.msra.mxu0 0.0
        %1716 = vmatprep.subr.mxu0 0.0
        %1717 = vmatpush1.msra.mxu0 0.0
        %1718 = vmatprep.subr.mxu0 0.0
        %1719 = vmatpush1.msra.mxu0 0.0
        %1720 = vmatprep.subr.mxu0 0.0
        %1721 = vmatpush1.msra.mxu0 0.0
        %1722 = vmatprep.subr.mxu0 0.0
        %1723 = vmatpush1.msra.mxu0 0.0
        %1724 = vmatprep.subr.mxu0 0.0
        %1725 = vmatpush1.msra.mxu0 0.0
        %1726 = vmatprep.subr.mxu0 0.0
        %1727 = vmatpush1.msra.mxu0 0.0
        %1728 = vmatprep.subr.mxu0 0.0
        %1729 = vmatpush1.msra.mxu0 0.0
        %1730 = vmatprep.subr.mxu0 0.0
        %1731 = vmatpush1.msra.mxu0 0.0
        %1732 = vmatprep.subr.mxu0 0.0
        %1733 = vmatpush1.msra.mxu0 0.0
        %1734 = vmatprep.subr.mxu0 0.0
        %1735 = vmatpush1.msra.mxu0 0.0
        %1736 = vmatprep.subr.mxu0 0.0
        %1737 = vmatpush1.msra.mxu0 0.0
        %1738 = vmatprep.subr.mxu0 0.0
        %1739 = vmatpush1.msra.mxu0 0.0
        %1740 = vmatprep.subr.mxu0 0.0
        %1741 = vmatpush1.msra.mxu0 0.0
        %1742 = vmatprep.subr.mxu0 0.0
        %1743 = vmatpush1.msra.mxu0 0.0
        %1744 = vmatprep.subr.mxu0 0.0
        %1745 = vmatpush1.msra.mxu0 0.0
        %1746 = vmatprep.subr.mxu0 0.0
        %1747 = vmatpush1.msra.mxu0 0.0
        %1748 = vmatprep.subr.mxu0 0.0
        %1749 = vmatpush1.msra.mxu0 0.0
        %1750 = vmatprep.mubr.f32.mxu0 0.0
        %1751 = vmatmul.mubr.f32.gmra.mrb[0].mxu0 %v1684
        %v1752 = vpop.f32.mrb[0].mxu0
        %v1753 = vadd.f32 %v1682, %v1752
        %v1754 = vpop.f32.mrb[0].mxu0
        %v1755 = vadd.f32 %v1682, %v1754
        %1756 = vdwg.mxu0
        %1757 = vmatprep.subr.mxu0 %v1643
        %1758 = vmatpush1.msra.mxu0 %v1642
        %1759 = vmatprep.subr.mxu0 %v1651
        %1760 = vmatpush1.msra.mxu0 %v1650
        %1761 = vmatprep.subr.mxu0 %v1659
        %1762 = vmatpush1.msra.mxu0 %v1658
        %1763 = vmatprep.subr.mxu0 %v1667
        %1764 = vmatpush1.msra.mxu0 %v1666
        %1765 = vmatprep.subr.mxu0 0.0
        %1766 = vmatpush1.msra.mxu0 0.0
        %1767 = vmatprep.subr.mxu0 0.0
        %1768 = vmatpush1.msra.mxu0 0.0
        %1769 = vmatprep.subr.mxu0 0.0
        %1770 = vmatpush1.msra.mxu0 0.0
        %1771 = vmatprep.subr.mxu0 0.0
        %1772 = vmatpush1.msra.mxu0 0.0
        %1773 = vmatprep.subr.mxu0 0.0
        %1774 = vmatpush1.msra.mxu0 0.0
        %1775 = vmatprep.subr.mxu0 0.0
        %1776 = vmatpush1.msra.mxu0 0.0
        %1777 = vmatprep.subr.mxu0 0.0
        %1778 = vmatpush1.msra.mxu0 0.0
        %1779 = vmatprep.subr.mxu0 0.0
        %1780 = vmatpush1.msra.mxu0 0.0
        %1781 = vmatprep.subr.mxu0 0.0
        %1782 = vmatpush1.msra.mxu0 0.0
        %1783 = vmatprep.subr.mxu0 0.0
        %1784 = vmatpush1.msra.mxu0 0.0
        %1785 = vmatprep.subr.mxu0 0.0
        %1786 = vmatpush1.msra.mxu0 0.0
        %1787 = vmatprep.subr.mxu0 0.0
        %1788 = vmatpush1.msra.mxu0 0.0
        %1789 = vmatprep.subr.mxu0 0.0
        %1790 = vmatpush1.msra.mxu0 0.0
        %1791 = vmatprep.subr.mxu0 0.0
        %1792 = vmatpush1.msra.mxu0 0.0
        %1793 = vmatprep.subr.mxu0 0.0
        %1794 = vmatpush1.msra.mxu0 0.0
        %1795 = vmatprep.subr.mxu0 0.0
        %1796 = vmatpush1.msra.mxu0 0.0
        %1797 = vmatprep.subr.mxu0 0.0
        %1798 = vmatpush1.msra.mxu0 0.0
        %1799 = vmatprep.subr.mxu0 0.0
        %1800 = vmatpush1.msra.mxu0 0.0
        %1801 = vmatprep.subr.mxu0 0.0
        %1802 = vmatpush1.msra.mxu0 0.0
        %1803 = vmatprep.subr.mxu0 0.0
        %1804 = vmatpush1.msra.mxu0 0.0
        %1805 = vmatprep.subr.mxu0 0.0
        %1806 = vmatpush1.msra.mxu0 0.0
        %1807 = vmatprep.subr.mxu0 0.0
        %1808 = vmatpush1.msra.mxu0 0.0
        %1809 = vmatprep.subr.mxu0 0.0
        %1810 = vmatpush1.msra.mxu0 0.0
        %1811 = vmatprep.subr.mxu0 0.0
        %1812 = vmatpush1.msra.mxu0 0.0
        %1813 = vmatprep.subr.mxu0 0.0
        %1814 = vmatpush1.msra.mxu0 0.0
        %1815 = vmatprep.subr.mxu0 0.0
        %1816 = vmatpush1.msra.mxu0 0.0
        %1817 = vmatprep.subr.mxu0 0.0
        %1818 = vmatpush1.msra.mxu0 0.0
        %1819 = vmatprep.subr.mxu0 0.0
        %1820 = vmatpush1.msra.mxu0 0.0
        %1821 = vmatprep.mubr.f32.mxu0 0.0
        %1822 = vmatmul.mubr.f32.gmra.mrb[0].mxu0 %v1684
        %v1823 = vpop.f32.mrb[0].mxu0
        %v1824 = vadd.f32 %v1682, %v1823
        %v1825 = vpop.f32.mrb[0].mxu0
        %v1826 = vadd.f32 %v1682, %v1825
        %1827 = vdwg.mxu0
        %1828 = vmatprep.subr.mxu0 %v1645
        %1829 = vmatpush1.msra.mxu0 %v1644
        %1830 = vmatprep.subr.mxu0 %v1653
        %1831 = vmatpush1.msra.mxu0 %v1652
        %1832 = vmatprep.subr.mxu0 %v1661
        %1833 = vmatpush1.msra.mxu0 %v1660
        %1834 = vmatprep.subr.mxu0 %v1669
        %1835 = vmatpush1.msra.mxu0 %v1668
        %1836 = vmatprep.subr.mxu0 0.0
        %1837 = vmatpush1.msra.mxu0 0.0
        %1838 = vmatprep.subr.mxu0 0.0
        %1839 = vmatpush1.msra.mxu0 0.0
        %1840 = vmatprep.subr.mxu0 0.0
        %1841 = vmatpush1.msra.mxu0 0.0
        %1842 = vmatprep.subr.mxu0 0.0
        %1843 = vmatpush1.msra.mxu0 0.0
        %1844 = vmatprep.subr.mxu0 0.0
        %1845 = vmatpush1.msra.mxu0 0.0
        %1846 = vmatprep.subr.mxu0 0.0
        %1847 = vmatpush1.msra.mxu0 0.0
        %1848 = vmatprep.subr.mxu0 0.0
        %1849 = vmatpush1.msra.mxu0 0.0
        %1850 = vmatprep.subr.mxu0 0.0
        %1851 = vmatpush1.msra.mxu0 0.0
        %1852 = vmatprep.subr.mxu0 0.0
        %1853 = vmatpush1.msra.mxu0 0.0
        %1854 = vmatprep.subr.mxu0 0.0
        %1855 = vmatpush1.msra.mxu0 0.0
        %1856 = vmatprep.subr.mxu0 0.0
        %1857 = vmatpush1.msra.mxu0 0.0
        %1858 = vmatprep.subr.mxu0 0.0
        %1859 = vmatpush1.msra.mxu0 0.0
        %1860 = vmatprep.subr.mxu0 0.0
        %1861 = vmatpush1.msra.mxu0 0.0
        %1862 = vmatprep.subr.mxu0 0.0
        %1863 = vmatpush1.msra.mxu0 0.0
        %1864 = vmatprep.subr.mxu0 0.0
        %1865 = vmatpush1.msra.mxu0 0.0
        %1866 = vmatprep.subr.mxu0 0.0
        %1867 = vmatpush1.msra.mxu0 0.0
        %1868 = vmatprep.subr.mxu0 0.0
        %1869 = vmatpush1.msra.mxu0 0.0
        %1870 = vmatprep.subr.mxu0 0.0
        %1871 = vmatpush1.msra.mxu0 0.0
        %1872 = vmatprep.subr.mxu0 0.0
        %1873 = vmatpush1.msra.mxu0 0.0
        %1874 = vmatprep.subr.mxu0 0.0
        %1875 = vmatpush1.msra.mxu0 0.0
        %1876 = vmatprep.subr.mxu0 0.0
        %1877 = vmatpush1.msra.mxu0 0.0
        %1878 = vmatprep.subr.mxu0 0.0
        %1879 = vmatpush1.msra.mxu0 0.0
        %1880 = vmatprep.subr.mxu0 0.0
        %1881 = vmatpush1.msra.mxu0 0.0
        %1882 = vmatprep.subr.mxu0 0.0
        %1883 = vmatpush1.msra.mxu0 0.0
        %1884 = vmatprep.subr.mxu0 0.0
        %1885 = vmatpush1.msra.mxu0 0.0
        %1886 = vmatprep.subr.mxu0 0.0
        %1887 = vmatpush1.msra.mxu0 0.0
        %1888 = vmatprep.subr.mxu0 0.0
        %1889 = vmatpush1.msra.mxu0 0.0
        %1890 = vmatprep.subr.mxu0 0.0
        %1891 = vmatpush1.msra.mxu0 0.0
        %1892 = vmatprep.mubr.f32.mxu0 0.0
        %1893 = vmatmul.mubr.f32.gmra.mrb[0].mxu0 %v1684
        %v1894 = vpop.f32.mrb[0].mxu0
        %v1895 = vadd.f32 %v1682, %v1894
        %v1896 = vpop.f32.mrb[0].mxu0
        %v1897 = vadd.f32 %v1682, %v1896
        %1898 = vdwg.mxu0
        %1899 = vmatprep.subr.mxu0 %v1647
        %1900 = vmatpush1.msra.mxu0 %v1646
        %1901 = vmatprep.subr.mxu0 %v1655
        %1902 = vmatpush1.msra.mxu0 %v1654
        %1903 = vmatprep.subr.mxu0 %v1663
        %1904 = vmatpush1.msra.mxu0 %v1662
        %1905 = vmatprep.subr.mxu0 %v1671
        %1906 = vmatpush1.msra.mxu0 %v1670
        %1907 = vmatprep.subr.mxu0 0.0
        %1908 = vmatpush1.msra.mxu0 0.0
        %1909 = vmatprep.subr.mxu0 0.0
        %1910 = vmatpush1.msra.mxu0 0.0
        %1911 = vmatprep.subr.mxu0 0.0
        %1912 = vmatpush1.msra.mxu0 0.0
        %1913 = vmatprep.subr.mxu0 0.0
        %1914 = vmatpush1.msra.mxu0 0.0
        %1915 = vmatprep.subr.mxu0 0.0
        %1916 = vmatpush1.msra.mxu0 0.0
        %1917 = vmatprep.subr.mxu0 0.0
        %1918 = vmatpush1.msra.mxu0 0.0
        %1919 = vmatprep.subr.mxu0 0.0
        %1920 = vmatpush1.msra.mxu0 0.0
        %1921 = vmatprep.subr.mxu0 0.0
        %1922 = vmatpush1.msra.mxu0 0.0
        %1923 = vmatprep.subr.mxu0 0.0
        %1924 = vmatpush1.msra.mxu0 0.0
        %1925 = vmatprep.subr.mxu0 0.0
        %1926 = vmatpush1.msra.mxu0 0.0
        %1927 = vmatprep.subr.mxu0 0.0
        %1928 = vmatpush1.msra.mxu0 0.0
        %1929 = vmatprep.subr.mxu0 0.0
        %1930 = vmatpush1.msra.mxu0 0.0
        %1931 = vmatprep.subr.mxu0 0.0
        %1932 = vmatpush1.msra.mxu0 0.0
        %1933 = vmatprep.subr.mxu0 0.0
        %1934 = vmatpush1.msra.mxu0 0.0
        %1935 = vmatprep.subr.mxu0 0.0
        %1936 = vmatpush1.msra.mxu0 0.0
        %1937 = vmatprep.subr.mxu0 0.0
        %1938 = vmatpush1.msra.mxu0 0.0
        %1939 = vmatprep.subr.mxu0 0.0
        %1940 = vmatpush1.msra.mxu0 0.0
        %1941 = vmatprep.subr.mxu0 0.0
        %1942 = vmatpush1.msra.mxu0 0.0
        %1943 = vmatprep.subr.mxu0 0.0
        %1944 = vmatpush1.msra.mxu0 0.0
        %1945 = vmatprep.subr.mxu0 0.0
        %1946 = vmatpush1.msra.mxu0 0.0
        %1947 = vmatprep.subr.mxu0 0.0
        %1948 = vmatpush1.msra.mxu0 0.0
        %1949 = vmatprep.subr.mxu0 0.0
        %1950 = vmatpush1.msra.mxu0 0.0
        %1951 = vmatprep.subr.mxu0 0.0
        %1952 = vmatpush1.msra.mxu0 0.0
        %1953 = vmatprep.subr.mxu0 0.0
        %1954 = vmatpush1.msra.mxu0 0.0
        %1955 = vmatprep.subr.mxu0 0.0
        %1956 = vmatpush1.msra.mxu0 0.0
        %1957 = vmatprep.subr.mxu0 0.0
        %1958 = vmatpush1.msra.mxu0 0.0
        %1959 = vmatprep.subr.mxu0 0.0
        %1960 = vmatpush1.msra.mxu0 0.0
        %1961 = vmatprep.subr.mxu0 0.0
        %1962 = vmatpush1.msra.mxu0 0.0
        %1963 = vmatprep.mubr.f32.mxu0 0.0
        %1964 = vmatmul.mubr.f32.gmra.mrb[0].mxu0 %v1684
        %v1965 = vpop.f32.mrb[0].mxu0
        %v1966 = vadd.f32 %v1682, %v1965
        %v1967 = vpop.f32.mrb[0].mxu0
        %v1968 = vadd.f32 %v1682, %v1967
        %1969 = vdwg.mxu0
        %v1970 = vxor.u32 %v1753, 2147483648
        %v1971 = vxor.u32 %v1755, 2147483648
        %v1972 = vxor.u32 %v1824, 2147483648
        %v1973 = vxor.u32 %v1826, 2147483648
        %v1974 = vxor.u32 %v1895, 2147483648
        %v1975 = vxor.u32 %v1897, 2147483648
        %v1976 = vxor.u32 %v1966, 2147483648
        %v1977 = vxor.u32 %v1968, 2147483648
        %v1978 = vmul.f32 %v1970, 1.442695
        %v1979 = vpow.pop %v1978
        %v1980 = vmul.f32 %v1971, 1.442695
        %v1981 = vpow.pop %v1980
        %v1982 = vmul.f32 %v1972, 1.442695
        %v1983 = vpow.pop %v1982
        %v1984 = vmul.f32 %v1973, 1.442695
        %v1985 = vpow.pop %v1984
        %v1986 = vmul.f32 %v1974, 1.442695
        %v1987 = vpow.pop %v1986
        %v1988 = vmul.f32 %v1975, 1.442695
        %v1989 = vpow.pop %v1988
        %v1990 = vmul.f32 %v1976, 1.442695
        %v1991 = vpow.pop %v1990
        %v1992 = vmul.f32 %v1977, 1.442695
        %v1993 = vpow.pop %v1992
        %v1994 = vadd.f32 %v1979, 1.0
        %v1995 = vadd.f32 %v1981, 1.0
        %v1996 = vadd.f32 %v1983, 1.0
        %v1997 = vadd.f32 %v1985, 1.0
        %v1998 = vadd.f32 %v1987, 1.0
        %v1999 = vadd.f32 %v1989, 1.0
        %v2000 = vadd.f32 %v1991, 1.0
        %v2001 = vadd.f32 %v1993, 1.0
        %v2002 = vrcp.pop %v1994
        %v2003 = vmul.f32 1.0, %v2002
        %v2004 = vrcp.pop %v1995
        %v2005 = vmul.f32 1.0, %v2004
        %v2006 = vrcp.pop %v1996
        %v2007 = vmul.f32 1.0, %v2006
        %v2008 = vrcp.pop %v1997
        %v2009 = vmul.f32 1.0, %v2008
        %v2010 = vrcp.pop %v1998
        %v2011 = vmul.f32 1.0, %v2010
        %v2012 = vrcp.pop %v1999
        %v2013 = vmul.f32 1.0, %v2012
        %v2014 = vrcp.pop %v2000
        %v2015 = vmul.f32 1.0, %v2014
        %v2016 = vrcp.pop %v2001
        %v2017 = vmul.f32 1.0, %v2016
        %v2026 = vcombine.low %v2003, %v2005
        %v2027 = vcombine.low %v2007, %v2009
        %v2028 = vcombine.low %v2011, %v2013
        %v2029 = vcombine.low %v2015, %v2017
        %v2031 = vunpack.c.l.s4 1966171168
        %v2032 = vunpack.c.0.s8 %v2031
        %v2033 = vlaneseq
        %v2034 = vshrl.u32 %v2033, 7
        %v2035 = vsub.s32 %v2032, %v2034
        %v2036 = vrot.slane %v2026, %v2035
        %v2038 = vunpack.c.l.s4 1966171168
        %v2039 = vunpack.c.0.s8 %v2038
        %v2040 = vlaneseq
        %v2041 = vshrl.u32 %v2040, 7
        %v2042 = vsub.s32 %v2039, %v2041
        %v2043 = vrot.slane %v2027, %v2042
        %v2045 = vunpack.c.l.s4 1966171168
        %v2046 = vunpack.c.0.s8 %v2045
        %v2047 = vlaneseq
        %v2048 = vshrl.u32 %v2047, 7
        %v2049 = vsub.s32 %v2046, %v2048
        %v2050 = vrot.slane %v2028, %v2049
        %v2052 = vunpack.c.l.s4 1966171168
        %v2053 = vunpack.c.0.s8 %v2052
        %v2054 = vlaneseq
        %v2055 = vshrl.u32 %v2054, 7
        %v2056 = vsub.s32 %v2053, %v2055
        %v2057 = vrot.slane %v2029, %v2056
        %v2058 = vcombine.low %v2036, %v2043
        %v2059 = vcombine.low %v2050, %v2057
        %v2061 = vunpack.c.l.s4 1966171168
        %v2062 = vunpack.c.0.s8 %v2061
        %v2063 = vlaneseq
        %v2064 = vshrl.u32 %v2063, 7
        %v2065 = vsub.s32 %v2062, %v2064
        %v2066 = vrot.slane %v2058, %v2065
        %v2068 = vunpack.c.l.s4 1966171168
        %v2069 = vunpack.c.0.s8 %v2068
        %v2070 = vlaneseq
        %v2071 = vshrl.u32 %v2070, 7
        %v2072 = vsub.s32 %v2069, %v2071
        %v2073 = vrot.slane %v2059, %v2072
        %v2074 = vcombine.low %v2066, %v2073
        %2076 = vst [vmem:[%s286] sm:$0xff] %v2074
        %s2077 = sand.u32 %s183, 1
        %s2078 = scalar_lea.sflag [#allocation4], %s2077
        %s2079 = sand.u32 %s183, 1
        %s2080 = smul.addr %s2079, 8
        %s2081 = scalar_lea.vmem [#allocation3], %s2080
        // Predicated region
        $region49: #{tpu_custom_call.1} parent=47 // pred_check
          %p2082 = pneg %p193
        $region50: #{tpu_custom_call.1} parent=47 // pred_check_branch
          %2084 = sbr.rel (%p2082) target = $region52
        $region51: #{tpu_custom_call.1} parent=47 // pred_region
          %s2085 = smul.u32 8, %s23
          %s2087 = ssub.s32 128, 128
          %2088 = vsyncadd %s2078, %s2087
          %s2089 = smul.addr %s2085, 16
          %s2090 = scalar_lea.hbm %s7, %s2089
          %s2092 = sshll.u32 %s2081, 4
          %s2093 = int_to_ptr.vmem [resolvable:$true] %s2092
          %2095 = dma.vmem_to_hbm [thread:$0]  %s2093, 128, %s2090, %s2078
        $region52: #{tpu_custom_call.1} parent=47 // pred_fallthru
          _
      $region48: #{tpu_custom_call.1} parent=5 // pred_fallthru
        _
      %p2096 = scmp.le.s32.totalorder 2, %s18
      // Predicated region
      $region53: #{tpu_custom_call.1} parent=5 // pred_check
        %p2097 = pneg %p2096
      $region54: #{tpu_custom_call.1} parent=5 // pred_check_branch
        %2099 = sbr.rel (%p2097) target = $region56
      $region55: #{tpu_custom_call.1} parent=5 // pred_region
        %s2100 = ssub.s32 %s18, 2
        // Predicated region
        $region57: #{tpu_custom_call.1} parent=55 // pred_check
          %p2101 = pneg %p199
        $region58: #{tpu_custom_call.1} parent=55 // pred_check_branch
          %2103 = sbr.rel (%p2101) target = $region60
        $region59: #{tpu_custom_call.1} parent=55 // pred_region
          %s2104 = sand.u32 %s184, 1
          %s2105 = scalar_lea.sflag [#allocation4], %s2104
          %s2106 = sand.u32 %s184, 1
          %s2107 = smul.addr %s2106, 8
          %s2108 = scalar_lea.vmem [#allocation3], %s2107
          %2109 = dma.done %s2105, 128
        $region60: #{tpu_custom_call.1} parent=55 // pred_fallthru
          _
      $region56: #{tpu_custom_call.1} parent=5 // pred_fallthru
        _
    $region6: #{tpu_custom_call.1} parent=1 // loop_footer
      %s22 = sadd.s32 1, %s18
    $region7: #{tpu_custom_call.1} parent=1 // loop_footer_branch
      %17 = sbr.rel target = $region3
    $region8: #{tpu_custom_call.1} parent=1 // loop_exit
      _
    %2110 = vsyncpa [#allocation4], 1
    %s2111 = scalar_lea.sflag [#allocation4], 1
    %2112 = vsyncpa %s2111, 1

</llo_original>
